<compile_context>
chip_gen: v7x
topology: tpu7x:2x2x1
jax: 0.10.0
libtpu: 0.0.40
codegen_flags: <defaults>
</compile_context>

<pallas_src>
import jax
import jax.numpy as jnp
from jax import lax
from jax.experimental import pallas as pl
from jax.experimental.pallas import tpu as pltpu


EPS = 1e-5  # PyTorch InstanceNorm2d default


def _make_kernel(Cin, Cout, KH, KW, Wp, Ho, Wo, L):
    """Build the per-sample kernel. L = Ho * Wp (row-major flattened output rows)."""
    inv_count = 1.0 / float(Ho * Wo)

    def kernel(x_ref, w_ref, g_ref, beta_ref, m_ref, o_ref):
        # x_ref    : (1, Cin, L_in)   reflection-padded input, spatial flattened
        #                             row-major with row stride Wp (+KW-1 tail pad)
        # w_ref    : (KH*KW, Cout, Cin) conv weight, one (Cout,Cin) slab per tap
        # g_ref    : (Cout, 1)        InstanceNorm gamma
        # beta_ref : (Cout, 1)        InstanceNorm beta
        # m_ref    : (1, L)           1.0 where the flattened column is valid (w<Wo)
        # o_ref    : (1, Cout, L)     lane-dense output (garbage cols sliced in glue)

        # Convolution as KH*KW accumulated matmuls on the MXU (f32 accumulate).
        # Each tap's contribution is a contiguous lane-slice of the flattened input.
        acc = jnp.zeros((Cout, L), dtype=jnp.float32)
        for k in range(KH * KW):
            kh, kw = k // KW, k % KW
            off = kh * Wp + kw
            x_slc = x_ref[0, :, off:off + L]                       # (Cin, L)
            acc += jnp.dot(w_ref[k], x_slc,
                           preferred_element_type=jnp.float32)     # (Cout, L)

        # InstanceNorm2d: per-channel stats over the *valid* spatial positions
        # (mask kills the Wp-Wo wrap columns).  Biased variance, all f32.
        mask = m_ref[...]                                          # (1, L)
        mean = jnp.sum(acc * mask, axis=1, keepdims=True) * inv_count      # (Cout,1)
        centered = acc - mean
        var = jnp.sum(centered * centered * mask, axis=1,
                      keepdims=True) * inv_count                   # (Cout, 1)
        inv_std = lax.rsqrt(var + EPS)

        # Affine + ReLU, lane-dense store.
        out = centered * inv_std * g_ref[...] + beta_ref[...]
        out = jnp.maximum(out, 0.0)
        o_ref[0] = out.astype(o_ref.dtype)

    return kernel


def generic_layer_forward(x, weight, bias, gamma, beta, padding=(1, 1, 1, 1)):
    """x: (N, Cin, H, W) f32 NCHW. weight: (Cout, Cin, KH, KW). Returns NCHW f32."""
    # Conv bias is exactly cancelled by the InstanceNorm mean subtraction -> dead work.
    del bias

    N, Cin, H, W = x.shape
    Cout, _, KH, KW = weight.shape
    pl_, pr, pt, pb = padding  # ReflectionPad2d order: (left, right, top, bottom)

    # --- glue: reflection pad (pure data movement) ---
    x_pad = jnp.pad(x, ((0, 0), (0, 0), (pt, pb), (pl_, pr)), mode="reflect")
    Hp, Wp = H + pt + pb, W + pl_ + pr
    Ho, Wo = Hp - KH + 1, Wp - KW + 1

    L = Ho * Wp                       # flattened span covering all output rows
    L_in = Hp * Wp + (KW - 1)         # tail pad keeps the last shifted window in-bounds

    x_flat = x_pad.reshape(N, Cin, Hp * Wp)
    x_flat = jnp.pad(x_flat, ((0, 0), (0, 0), (0, KW - 1)))

    # Weight as (KH*KW, Cout, Cin): one (Cout, Cin) slab per conv tap.
    w_r = weight.transpose(2, 3, 0, 1).reshape(KH * KW, Cout, Cin).astype(jnp.float32)
    g2 = gamma.reshape(Cout, 1).astype(jnp.float32)
    b2 = beta.reshape(Cout, 1).astype(jnp.float32)

    # Valid-column mask over the Ho x Wp flattened grid (1.0 where w < Wo).
    col_valid = (jnp.arange(Wp, dtype=jnp.int32) < Wo).astype(jnp.float32)
    mask = jnp.tile(col_valid, Ho).reshape(1, L)

    kernel = _make_kernel(Cin, Cout, KH, KW, Wp, Ho, Wo, L)

    # Advisory cost estimate + VMEM budget (double-buffered blocks).
    flops = int(2 * N * (KH * KW) * Cout * Cin * L + 8 * N * Cout * L)
    bytes_accessed = int(4 * (x_flat.size + w_r.size + N * Cout * L
                              + mask.size + 2 * Cout))
    per_step_bytes = 4 * (Cin * L_in + Cout * L + L) \
        + 4 * (KH * KW * Cout * Cin + 2 * Cout)
    vmem_limit = int(min(32 << 20, max(16 << 20, 4 * 2 * per_step_bytes)))

    out_flat = pl.pallas_call(
        kernel,
        out_shape=jax.ShapeDtypeStruct((N, Cout, L), jnp.float32),
        grid=(N,),
        in_specs=[
            pl.BlockSpec((1, Cin, L_in), lambda n: (n, 0, 0)),
            pl.BlockSpec((KH * KW, Cout, Cin), lambda n: (0, 0, 0)),
            pl.BlockSpec((Cout, 1), lambda n: (0, 0)),
            pl.BlockSpec((Cout, 1), lambda n: (0, 0)),
            pl.BlockSpec((1, L), lambda n: (0, 0)),
        ],
        out_specs=pl.BlockSpec((1, Cout, L), lambda n: (n, 0, 0)),
        compiler_params=pltpu.CompilerParams(
            dimension_semantics=("parallel",),
            vmem_limit_bytes=vmem_limit),
        cost_estimate=pl.CostEstimate(
            flops=flops, transcendentals=N * Cout,
            bytes_accessed=bytes_accessed),
    )(x_flat, w_r, g2, b2, mask)

    # --- glue: (N, Cout, Ho*Wp) -> (N, Cout, Ho, Wp) -> drop wrap columns ---
    return out_flat.reshape(N, Cout, Ho, Wp)[:, :, :, :Wo]


def _reference_forward(x, weight, bias, gamma, beta, padding=(1, 1, 1, 1)):
    """Pure-JAX reference (reflection pad + NCHW conv WITH bias + instance norm + relu)."""
    pl_, pr, pt, pb = padding
    x_pad = jnp.pad(x, ((0, 0), (0, 0), (pt, pb), (pl_, pr)), mode="reflect")
    y = lax.conv_general_dilated(
        x_pad, weight, window_strides=(1, 1), padding="VALID",
        dimension_numbers=("NCHW", "OIHW", "NCHW"))
    y = y + bias[None, :, None, None]
    mean = jnp.mean(y, axis=(2, 3), keepdims=True)
    var = jnp.mean((y - mean) ** 2, axis=(2, 3), keepdims=True)
    yn = (y - mean) * lax.rsqrt(var + EPS)
    out = yn * gamma[None, :, None, None] + beta[None, :, None, None]
    return jnp.maximum(out, 0.0)


if __name__ == "__main__":
    # GenericLayer(Conv2d(4 -> 8, k=3, s=1), padding=(1,1,1,1), activation=ReLU)
    N, Cin, H, W = 2, 4, 16, 16
    Cout, K = 8, 3
    padding = (1, 1, 1, 1)

    key = jax.random.PRNGKey(0)
    kx, kw, kb = jax.random.split(key, 3)
    x = jax.random.normal(kx, (N, Cin, H, W), dtype=jnp.float32)
    weight = jax.random.normal(kw, (Cout, Cin, K, K), dtype=jnp.float32) * 0.1
    bias = jax.random.normal(kb, (Cout,), dtype=jnp.float32) * 0.1
    gamma = jnp.ones((Cout,), dtype=jnp.float32)   # InstanceNorm2d affine init
    beta = jnp.zeros((Cout,), dtype=jnp.float32)

    out = jax.block_until_ready(
        generic_layer_forward(x, weight, bias, gamma, beta, padding))
    ref = jax.block_until_ready(
        _reference_forward(x, weight, bias, gamma, beta, padding))

    assert out.shape == (N, Cout, H, W), out.shape
    assert jnp.allclose(out, ref, atol=1e-4, rtol=1e-4), \
        float(jnp.max(jnp.abs(out - ref)))

    print("KERNEL_OK")
</pallas_src>

<mosaic_0001>
module attributes {stable_mosaic.version = 11 : i64} {
  func.func @kernel(%arg0: i32, %arg1: memref<1x4x326xf32, #tpu.memory_space<vmem>>, %arg2: memref<9x8x4xf32, #tpu.memory_space<vmem>>, %arg3: memref<8x1xf32, #tpu.memory_space<vmem>>, %arg4: memref<8x1xf32, #tpu.memory_space<vmem>>, %arg5: memref<1x288xf32, #tpu.memory_space<vmem>>, %arg6: memref<1x8x288xf32, #tpu.memory_space<vmem>>) attributes {dimension_semantics = [#tpu.dimension_semantics<parallel>], iteration_bounds = array<i64: 2>, scalar_prefetch = 0 : i64, scratch_operands = 0 : i64, tpu.core_type = #tpu.core_type<tc>, window_params = [{transform_indices = @transform_0, window_bounds = array<i64: 1, 4, 326>}, {pipeline_mode = #tpu.pipeline_mode<synchronous>, transform_indices = @transform_1, window_bounds = array<i64: 9, 8, 4>}, {pipeline_mode = #tpu.pipeline_mode<synchronous>, transform_indices = @transform_2, window_bounds = array<i64: 8, 1>}, {pipeline_mode = #tpu.pipeline_mode<synchronous>, transform_indices = @transform_3, window_bounds = array<i64: 8, 1>}, {pipeline_mode = #tpu.pipeline_mode<synchronous>, transform_indices = @transform_4, window_bounds = array<i64: 1, 288>}, {transform_indices = @transform_5, window_bounds = array<i64: 1, 8, 288>}]} {
    %cst = arith.constant 0.000000e+00 : f32
    %0 = vector.broadcast %cst : f32 to vector<8x288xf32>
    %c0 = arith.constant 0 : index
    %c0_0 = arith.constant 0 : index
    %c0_1 = arith.constant 0 : index
    %1 = vector.load %arg1[%c0, %c0_0, %c0_1] : memref<1x4x326xf32, #tpu.memory_space<vmem>>, vector<1x4x288xf32>
    %2 = vector.shape_cast %1 : vector<1x4x288xf32> to vector<4x288xf32>
    %c0_2 = arith.constant 0 : index
    %c0_3 = arith.constant 0 : index
    %c0_4 = arith.constant 0 : index
    %3 = vector.load %arg2[%c0_2, %c0_3, %c0_4] : memref<9x8x4xf32, #tpu.memory_space<vmem>>, vector<1x8x4xf32>
    %4 = vector.shape_cast %3 : vector<1x8x4xf32> to vector<8x4xf32>
    %cst_5 = arith.constant dense<0.000000e+00> : vector<8x288xf32>
    %5 = tpu.matmul %4, %2, %cst_5 {dimension_numbers = #tpu.dot_dimension_numbers<[1], [0], [0], [1], [0, 0, 1, 1], [], []>} : vector<8x4xf32>, vector<4x288xf32>, vector<8x288xf32> -> vector<8x288xf32>
    %6 = arith.addf %0, %5 : vector<8x288xf32>
    %c0_6 = arith.constant 0 : index
    %c0_7 = arith.constant 0 : index
    %c1 = arith.constant 1 : index
    %7 = vector.load %arg1[%c0_6, %c0_7, %c1] : memref<1x4x326xf32, #tpu.memory_space<vmem>>, vector<1x4x288xf32>
    %8 = vector.shape_cast %7 : vector<1x4x288xf32> to vector<4x288xf32>
    %c1_8 = arith.constant 1 : index
    %c0_9 = arith.constant 0 : index
    %c0_10 = arith.constant 0 : index
    %9 = vector.load %arg2[%c1_8, %c0_9, %c0_10] : memref<9x8x4xf32, #tpu.memory_space<vmem>>, vector<1x8x4xf32>
    %10 = vector.shape_cast %9 : vector<1x8x4xf32> to vector<8x4xf32>
    %cst_11 = arith.constant dense<0.000000e+00> : vector<8x288xf32>
    %11 = tpu.matmul %10, %8, %cst_11 {dimension_numbers = #tpu.dot_dimension_numbers<[1], [0], [0], [1], [0, 0, 1, 1], [], []>} : vector<8x4xf32>, vector<4x288xf32>, vector<8x288xf32> -> vector<8x288xf32>
    %12 = arith.addf %6, %11 : vector<8x288xf32>
    %c0_12 = arith.constant 0 : index
    %c0_13 = arith.constant 0 : index
    %c2 = arith.constant 2 : index
    %13 = vector.load %arg1[%c0_12, %c0_13, %c2] : memref<1x4x326xf32, #tpu.memory_space<vmem>>, vector<1x4x288xf32>
    %14 = vector.shape_cast %13 : vector<1x4x288xf32> to vector<4x288xf32>
    %c2_14 = arith.constant 2 : index
    %c0_15 = arith.constant 0 : index
    %c0_16 = arith.constant 0 : index
    %15 = vector.load %arg2[%c2_14, %c0_15, %c0_16] : memref<9x8x4xf32, #tpu.memory_space<vmem>>, vector<1x8x4xf32>
    %16 = vector.shape_cast %15 : vector<1x8x4xf32> to vector<8x4xf32>
    %cst_17 = arith.constant dense<0.000000e+00> : vector<8x288xf32>
    %17 = tpu.matmul %16, %14, %cst_17 {dimension_numbers = #tpu.dot_dimension_numbers<[1], [0], [0], [1], [0, 0, 1, 1], [], []>} : vector<8x4xf32>, vector<4x288xf32>, vector<8x288xf32> -> vector<8x288xf32>
    %18 = arith.addf %12, %17 : vector<8x288xf32>
    %c0_18 = arith.constant 0 : index
    %c0_19 = arith.constant 0 : index
    %c18 = arith.constant 18 : index
    %19 = vector.load %arg1[%c0_18, %c0_19, %c18] : memref<1x4x326xf32, #tpu.memory_space<vmem>>, vector<1x4x288xf32>
    %20 = vector.shape_cast %19 : vector<1x4x288xf32> to vector<4x288xf32>
    %c3 = arith.constant 3 : index
    %c0_20 = arith.constant 0 : index
    %c0_21 = arith.constant 0 : index
    %21 = vector.load %arg2[%c3, %c0_20, %c0_21] : memref<9x8x4xf32, #tpu.memory_space<vmem>>, vector<1x8x4xf32>
    %22 = vector.shape_cast %21 : vector<1x8x4xf32> to vector<8x4xf32>
    %cst_22 = arith.constant dense<0.000000e+00> : vector<8x288xf32>
    %23 = tpu.matmul %22, %20, %cst_22 {dimension_numbers = #tpu.dot_dimension_numbers<[1], [0], [0], [1], [0, 0, 1, 1], [], []>} : vector<8x4xf32>, vector<4x288xf32>, vector<8x288xf32> -> vector<8x288xf32>
    %24 = arith.addf %18, %23 : vector<8x288xf32>
    %c0_23 = arith.constant 0 : index
    %c0_24 = arith.constant 0 : index
    %c19 = arith.constant 19 : index
    %25 = vector.load %arg1[%c0_23, %c0_24, %c19] : memref<1x4x326xf32, #tpu.memory_space<vmem>>, vector<1x4x288xf32>
    %26 = vector.shape_cast %25 : vector<1x4x288xf32> to vector<4x288xf32>
    %c4 = arith.constant 4 : index
    %c0_25 = arith.constant 0 : index
    %c0_26 = arith.constant 0 : index
    %27 = vector.load %arg2[%c4, %c0_25, %c0_26] : memref<9x8x4xf32, #tpu.memory_space<vmem>>, vector<1x8x4xf32>
    %28 = vector.shape_cast %27 : vector<1x8x4xf32> to vector<8x4xf32>
    %cst_27 = arith.constant dense<0.000000e+00> : vector<8x288xf32>
    %29 = tpu.matmul %28, %26, %cst_27 {dimension_numbers = #tpu.dot_dimension_numbers<[1], [0], [0], [1], [0, 0, 1, 1], [], []>} : vector<8x4xf32>, vector<4x288xf32>, vector<8x288xf32> -> vector<8x288xf32>
    %30 = arith.addf %24, %29 : vector<8x288xf32>
    %c0_28 = arith.constant 0 : index
    %c0_29 = arith.constant 0 : index
    %c20 = arith.constant 20 : index
    %31 = vector.load %arg1[%c0_28, %c0_29, %c20] : memref<1x4x326xf32, #tpu.memory_space<vmem>>, vector<1x4x288xf32>
    %32 = vector.shape_cast %31 : vector<1x4x288xf32> to vector<4x288xf32>
    %c5 = arith.constant 5 : index
    %c0_30 = arith.constant 0 : index
    %c0_31 = arith.constant 0 : index
    %33 = vector.load %arg2[%c5, %c0_30, %c0_31] : memref<9x8x4xf32, #tpu.memory_space<vmem>>, vector<1x8x4xf32>
    %34 = vector.shape_cast %33 : vector<1x8x4xf32> to vector<8x4xf32>
    %cst_32 = arith.constant dense<0.000000e+00> : vector<8x288xf32>
    %35 = tpu.matmul %34, %32, %cst_32 {dimension_numbers = #tpu.dot_dimension_numbers<[1], [0], [0], [1], [0, 0, 1, 1], [], []>} : vector<8x4xf32>, vector<4x288xf32>, vector<8x288xf32> -> vector<8x288xf32>
    %36 = arith.addf %30, %35 : vector<8x288xf32>
    %c0_33 = arith.constant 0 : index
    %c0_34 = arith.constant 0 : index
    %c36 = arith.constant 36 : index
    %37 = vector.load %arg1[%c0_33, %c0_34, %c36] : memref<1x4x326xf32, #tpu.memory_space<vmem>>, vector<1x4x288xf32>
    %38 = vector.shape_cast %37 : vector<1x4x288xf32> to vector<4x288xf32>
    %c6 = arith.constant 6 : index
    %c0_35 = arith.constant 0 : index
    %c0_36 = arith.constant 0 : index
    %39 = vector.load %arg2[%c6, %c0_35, %c0_36] : memref<9x8x4xf32, #tpu.memory_space<vmem>>, vector<1x8x4xf32>
    %40 = vector.shape_cast %39 : vector<1x8x4xf32> to vector<8x4xf32>
    %cst_37 = arith.constant dense<0.000000e+00> : vector<8x288xf32>
    %41 = tpu.matmul %40, %38, %cst_37 {dimension_numbers = #tpu.dot_dimension_numbers<[1], [0], [0], [1], [0, 0, 1, 1], [], []>} : vector<8x4xf32>, vector<4x288xf32>, vector<8x288xf32> -> vector<8x288xf32>
    %42 = arith.addf %36, %41 : vector<8x288xf32>
    %c0_38 = arith.constant 0 : index
    %c0_39 = arith.constant 0 : index
    %c37 = arith.constant 37 : index
    %43 = vector.load %arg1[%c0_38, %c0_39, %c37] : memref<1x4x326xf32, #tpu.memory_space<vmem>>, vector<1x4x288xf32>
    %44 = vector.shape_cast %43 : vector<1x4x288xf32> to vector<4x288xf32>
    %c7 = arith.constant 7 : index
    %c0_40 = arith.constant 0 : index
    %c0_41 = arith.constant 0 : index
    %45 = vector.load %arg2[%c7, %c0_40, %c0_41] : memref<9x8x4xf32, #tpu.memory_space<vmem>>, vector<1x8x4xf32>
    %46 = vector.shape_cast %45 : vector<1x8x4xf32> to vector<8x4xf32>
    %cst_42 = arith.constant dense<0.000000e+00> : vector<8x288xf32>
    %47 = tpu.matmul %46, %44, %cst_42 {dimension_numbers = #tpu.dot_dimension_numbers<[1], [0], [0], [1], [0, 0, 1, 1], [], []>} : vector<8x4xf32>, vector<4x288xf32>, vector<8x288xf32> -> vector<8x288xf32>
    %48 = arith.addf %42, %47 : vector<8x288xf32>
    %c0_43 = arith.constant 0 : index
    %c0_44 = arith.constant 0 : index
    %c38 = arith.constant 38 : index
    %49 = vector.load %arg1[%c0_43, %c0_44, %c38] : memref<1x4x326xf32, #tpu.memory_space<vmem>>, vector<1x4x288xf32>
    %50 = vector.shape_cast %49 : vector<1x4x288xf32> to vector<4x288xf32>
    %c8 = arith.constant 8 : index
    %c0_45 = arith.constant 0 : index
    %c0_46 = arith.constant 0 : index
    %51 = vector.load %arg2[%c8, %c0_45, %c0_46] : memref<9x8x4xf32, #tpu.memory_space<vmem>>, vector<1x8x4xf32>
    %52 = vector.shape_cast %51 : vector<1x8x4xf32> to vector<8x4xf32>
    %cst_47 = arith.constant dense<0.000000e+00> : vector<8x288xf32>
    %53 = tpu.matmul %52, %50, %cst_47 {dimension_numbers = #tpu.dot_dimension_numbers<[1], [0], [0], [1], [0, 0, 1, 1], [], []>} : vector<8x4xf32>, vector<4x288xf32>, vector<8x288xf32> -> vector<8x288xf32>
    %54 = arith.addf %48, %53 : vector<8x288xf32>
    %c0_48 = arith.constant 0 : index
    %c0_49 = arith.constant 0 : index
    %55 = vector.load %arg5[%c0_48, %c0_49] : memref<1x288xf32, #tpu.memory_space<vmem>>, vector<1x288xf32>
    %56 = vector.broadcast %55 : vector<1x288xf32> to vector<8x288xf32>
    %57 = arith.mulf %54, %56 : vector<8x288xf32>
    %cst_50 = arith.constant dense<0.000000e+00> : vector<8xf32>
    %58 = vector.multi_reduction <add>, %57, %cst_50 [1] : vector<8x288xf32> to vector<8xf32>
    %59 = vector.shape_cast %58 : vector<8xf32> to vector<8x1xf32>
    %cst_51 = arith.constant 3.906250e-03 : f32
    %60 = vector.broadcast %cst_51 : f32 to vector<8x1xf32>
    %61 = arith.mulf %59, %60 : vector<8x1xf32>
    %62 = vector.broadcast %61 : vector<8x1xf32> to vector<8x288xf32>
    %63 = arith.subf %54, %62 : vector<8x288xf32>
    %64 = arith.mulf %63, %63 : vector<8x288xf32>
    %65 = vector.broadcast %55 : vector<1x288xf32> to vector<8x288xf32>
    %66 = arith.mulf %64, %65 : vector<8x288xf32>
    %cst_52 = arith.constant dense<0.000000e+00> : vector<8xf32>
    %67 = vector.multi_reduction <add>, %66, %cst_52 [1] : vector<8x288xf32> to vector<8xf32>
    %68 = vector.shape_cast %67 : vector<8xf32> to vector<8x1xf32>
    %cst_53 = arith.constant 3.906250e-03 : f32
    %69 = vector.broadcast %cst_53 : f32 to vector<8x1xf32>
    %70 = arith.mulf %68, %69 : vector<8x1xf32>
    %cst_54 = arith.constant 9.99999974E-6 : f32
    %71 = vector.broadcast %cst_54 : f32 to vector<8x1xf32>
    %72 = arith.addf %70, %71 : vector<8x1xf32>
    %73 = math.rsqrt %72 : vector<8x1xf32>
    %74 = vector.broadcast %73 : vector<8x1xf32> to vector<8x288xf32>
    %75 = arith.mulf %63, %74 : vector<8x288xf32>
    %c0_55 = arith.constant 0 : index
    %c0_56 = arith.constant 0 : index
    %76 = vector.load %arg3[%c0_55, %c0_56] : memref<8x1xf32, #tpu.memory_space<vmem>>, vector<8x1xf32>
    %77 = vector.broadcast %76 : vector<8x1xf32> to vector<8x288xf32>
    %78 = arith.mulf %75, %77 : vector<8x288xf32>
    %c0_57 = arith.constant 0 : index
    %c0_58 = arith.constant 0 : index
    %79 = vector.load %arg4[%c0_57, %c0_58] : memref<8x1xf32, #tpu.memory_space<vmem>>, vector<8x1xf32>
    %80 = vector.broadcast %79 : vector<8x1xf32> to vector<8x288xf32>
    %81 = arith.addf %78, %80 : vector<8x288xf32>
    %cst_59 = arith.constant 0.000000e+00 : f32
    %82 = vector.broadcast %cst_59 : f32 to vector<8x288xf32>
    %83 = arith.maximumf %81, %82 : vector<8x288xf32>
    %c0_60 = arith.constant 0 : index
    %c0_61 = arith.constant 0 : index
    %c0_62 = arith.constant 0 : index
    %84 = vector.load %arg6[%c0_60, %c0_61, %c0_62] : memref<1x8x288xf32, #tpu.memory_space<vmem>>, vector<1x8x288xf32>
    %85 = vector.shape_cast %84 : vector<1x8x288xf32> to vector<8x288xf32>
    %86 = vector.shape_cast %83 : vector<8x288xf32> to vector<1x8x288xf32>
    tpu.vector_store %arg6[%c0_60, %c0_61, %c0_62], %86 {strides = array<i32>} : memref<1x8x288xf32, #tpu.memory_space<vmem>>, vector<1x8x288xf32>,
    return
  }
  func.func @transform_0(%arg0: i32) -> (i32, i32, i32) {
    %c0_i32 = arith.constant 0 : i32
    %c0_i32_0 = arith.constant 0 : i32
    %c0_i32_1 = arith.constant 0 : i32
    return %arg0, %c0_i32, %c0_i32_0 : i32, i32, i32
  }
  func.func @transform_1(%arg0: i32) -> (i32, i32, i32) {
    %c0_i32 = arith.constant 0 : i32
    %c0_i32_0 = arith.constant 0 : i32
    %c0_i32_1 = arith.constant 0 : i32
    %c0_i32_2 = arith.constant 0 : i32
    return %c0_i32, %c0_i32_0, %c0_i32_1 : i32, i32, i32
  }
  func.func @transform_2(%arg0: i32) -> (i32, i32) {
    %c0_i32 = arith.constant 0 : i32
    %c0_i32_0 = arith.constant 0 : i32
    %c0_i32_1 = arith.constant 0 : i32
    return %c0_i32, %c0_i32_0 : i32, i32
  }
  func.func @transform_3(%arg0: i32) -> (i32, i32) {
    %c0_i32 = arith.constant 0 : i32
    %c0_i32_0 = arith.constant 0 : i32
    %c0_i32_1 = arith.constant 0 : i32
    return %c0_i32, %c0_i32_0 : i32, i32
  }
  func.func @transform_4(%arg0: i32) -> (i32, i32) {
    %c0_i32 = arith.constant 0 : i32
    %c0_i32_0 = arith.constant 0 : i32
    %c0_i32_1 = arith.constant 0 : i32
    return %c0_i32, %c0_i32_0 : i32, i32
  }
  func.func @transform_5(%arg0: i32) -> (i32, i32, i32) {
    %c0_i32 = arith.constant 0 : i32
    %c0_i32_0 = arith.constant 0 : i32
    %c0_i32_1 = arith.constant 0 : i32
    return %arg0, %c0_i32, %c0_i32_0 : i32, i32, i32
  }
}

</mosaic_0001>

<llo_original>
// kernel: tpu_custom_call.1
$region0: #{tpu_custom_call.1}
  #allocation0 [shape = 'u32[]', space=smem, size = 0x4, offset = 0x4, fixed_abs, tag = 'smem constant byte address 0x4 - core index']
  #allocation1 [shape = 'u32[144,128]{1,0:T(1,128)}', space=vmem, size = 0x12000, scoped, tag = 'internal scratch']
  %s0 = inlined_call_operand.vmem [shape: f32[2,4,326], index: 0, kind: input, shape index: {}]
  %s1 = inlined_call_operand.vmem [shape: f32[9,8,4], index: 1, kind: input, shape index: {}]
  %s2 = inlined_call_operand.vmem [shape: f32[8,1], index: 2, kind: input, shape index: {}]
  %s3 = inlined_call_operand.vmem [shape: f32[8,1], index: 3, kind: input, shape index: {}]
  %s4 = inlined_call_operand.vmem [shape: f32[1,288], index: 4, kind: input, shape index: {}]
  %s5 = inlined_call_operand.hbm [shape: f32[2,8,288], index: 5, kind: output, shape index: {}]
  %s6 = sld [smem:[#allocation0]]
  $region53: #{tpu_custom_call.1} parent=0
    _
  %s8 = ssub.s32 1, %s6
  %s9 = scalar_select 0, %s8, %s6
  $region1: #{tpu_custom_call.1} parent=0
    #allocation2 [shape = 'u8[24576]{0}', space=vmem, size = 0x6000, scoped, tag = 'output window, operand 0']
    #allocation3 [shape = 's32[2]{0}', space=sflag, size = 0x8, scoped, tag = 'scoped memory for tpu_custom_call.1']
    %10 = vsyncpa [#allocation3], 0
    %s11 = scalar_lea.sflag [#allocation3], 1
    %12 = vsyncpa %s11, 0
    loop: start=0, step=1, limit=4
    $region2: #{tpu_custom_call.1} parent=1 // loop_pre_header
      _
    $region3: #{tpu_custom_call.1} parent=1 // loop_header
      %s14 = sphi 0, %s18
      %p15 = scmp.ge.s32.totalorder %s14, 4
      %s24 = sphi 0, %s26
      %s27 = sphi 0, %s24
      %s28 = sphi 0, %s27
      %s44 = sphi 0, %s28
      %s48 = sphi 0, %s48
      %s50 = sphi 0, %s48
      %s51 = sphi 0, %s50
      %s65 = sphi 0, %s51
      %s69 = sphi 0, %s69
      %s71 = sphi 0, %s69
      %s72 = sphi 0, %s71
      %s86 = sphi 0, %s72
      %s90 = sphi 0, %s90
      %s92 = sphi 0, %s90
      %s93 = sphi 0, %s92
      %s107 = sphi 0, %s93
      %s111 = sphi 0, %s111
      %s113 = sphi 0, %s111
      %s114 = sphi 0, %s113
      %s128 = sphi 0, %s114
      %s134 = sphi 0, %s136
      %s137 = sphi 0, %s134
      %s138 = sphi 0, %s137
      %s154 = sphi 0, %s138
    $region4: #{tpu_custom_call.1} parent=1 // loop_header_branch
      %17 = sbr.rel (%p15) target = $region8
    $region5: #{tpu_custom_call.1} parent=1 // loop_body
      %s19 = ssub.s32 %s14, 1
      %s20 = ssub.s32 %s14, 2
      %s21 = sadd.s32 %s14, 1
      %s22 = ssub.s32 %s14, %s21
      %p23 = scmp.eq.s32.totalorder %s22, 0
      %s25 = sadd.s32 %s24, 1
      %s26 = scalar_select %p23, %s24, %s25
      %p29 = pneg %p23
      %p30 = scmp.eq.s32.totalorder %s14, 1
      %p31 = por %p29, %p30
      %p32 = scmp.ne.s32.totalorder %s24, %s27
      %p33 = scmp.eq.s32.totalorder %s14, 0
      %p34 = por %p32, %p33
      %p35 = scmp.ne.s32.totalorder %s24, %s27
      %p36 = scmp.eq.s32.totalorder %s19, 1
      %p37 = por %p35, %p36
      %p38 = scmp.ne.s32.totalorder %s27, %s28
      %p39 = scmp.eq.s32.totalorder %s19, 0
      %p40 = por %p38, %p39
      %p41 = scmp.ne.s32.totalorder %s27, %s28
      %p42 = scmp.eq.s32.totalorder %s20, 1
      %p43 = por %p41, %p42
      %p45 = scmp.ne.s32.totalorder %s28, %s44
      %p46 = scmp.eq.s32.totalorder %s20, 0
      %p47 = por %p45, %p46
      %s49 = sadd.s32 %s48, 1
      %p52 = scmp.eq.s32.totalorder %s14, 1
      %p53 = scmp.ne.s32.totalorder %s48, %s50
      %p54 = scmp.eq.s32.totalorder %s14, 0
      %p55 = por %p53, %p54
      %p56 = scmp.ne.s32.totalorder %s48, %s50
      %p57 = scmp.eq.s32.totalorder %s19, 1
      %p58 = por %p56, %p57
      %p59 = scmp.ne.s32.totalorder %s50, %s51
      %p60 = scmp.eq.s32.totalorder %s19, 0
      %p61 = por %p59, %p60
      %p62 = scmp.ne.s32.totalorder %s50, %s51
      %p63 = scmp.eq.s32.totalorder %s20, 1
      %p64 = por %p62, %p63
      %p66 = scmp.ne.s32.totalorder %s51, %s65
      %p67 = scmp.eq.s32.totalorder %s20, 0
      %p68 = por %p66, %p67
      %s70 = sadd.s32 %s69, 1
      %p73 = scmp.eq.s32.totalorder %s14, 1
      %p74 = scmp.ne.s32.totalorder %s69, %s71
      %p75 = scmp.eq.s32.totalorder %s14, 0
      %p76 = por %p74, %p75
      %p77 = scmp.ne.s32.totalorder %s69, %s71
      %p78 = scmp.eq.s32.totalorder %s19, 1
      %p79 = por %p77, %p78
      %p80 = scmp.ne.s32.totalorder %s71, %s72
      %p81 = scmp.eq.s32.totalorder %s19, 0
      %p82 = por %p80, %p81
      %p83 = scmp.ne.s32.totalorder %s71, %s72
      %p84 = scmp.eq.s32.totalorder %s20, 1
      %p85 = por %p83, %p84
      %p87 = scmp.ne.s32.totalorder %s72, %s86
      %p88 = scmp.eq.s32.totalorder %s20, 0
      %p89 = por %p87, %p88
      %s91 = sadd.s32 %s90, 1
      %p94 = scmp.eq.s32.totalorder %s14, 1
      %p95 = scmp.ne.s32.totalorder %s90, %s92
      %p96 = scmp.eq.s32.totalorder %s14, 0
      %p97 = por %p95, %p96
      %p98 = scmp.ne.s32.totalorder %s90, %s92
      %p99 = scmp.eq.s32.totalorder %s19, 1
      %p100 = por %p98, %p99
      %p101 = scmp.ne.s32.totalorder %s92, %s93
      %p102 = scmp.eq.s32.totalorder %s19, 0
      %p103 = por %p101, %p102
      %p104 = scmp.ne.s32.totalorder %s92, %s93
      %p105 = scmp.eq.s32.totalorder %s20, 1
      %p106 = por %p104, %p105
      %p108 = scmp.ne.s32.totalorder %s93, %s107
      %p109 = scmp.eq.s32.totalorder %s20, 0
      %p110 = por %p108, %p109
      %s112 = sadd.s32 %s111, 1
      %p115 = scmp.eq.s32.totalorder %s14, 1
      %p116 = scmp.ne.s32.totalorder %s111, %s113
      %p117 = scmp.eq.s32.totalorder %s14, 0
      %p118 = por %p116, %p117
      %p119 = scmp.ne.s32.totalorder %s111, %s113
      %p120 = scmp.eq.s32.totalorder %s19, 1
      %p121 = por %p119, %p120
      %p122 = scmp.ne.s32.totalorder %s113, %s114
      %p123 = scmp.eq.s32.totalorder %s19, 0
      %p124 = por %p122, %p123
      %p125 = scmp.ne.s32.totalorder %s113, %s114
      %p126 = scmp.eq.s32.totalorder %s20, 1
      %p127 = por %p125, %p126
      %p129 = scmp.ne.s32.totalorder %s114, %s128
      %p130 = scmp.eq.s32.totalorder %s20, 0
      %p131 = por %p129, %p130
      %s132 = ssub.s32 %s14, %s21
      %p133 = scmp.eq.s32.totalorder %s132, 0
      %s135 = sadd.s32 %s134, 1
      %s136 = scalar_select %p133, %s134, %s135
      %p139 = pneg %p133
      %p140 = scmp.eq.s32.totalorder %s14, 1
      %p141 = por %p139, %p140
      %p142 = scmp.ne.s32.totalorder %s134, %s137
      %p143 = scmp.eq.s32.totalorder %s14, 0
      %p144 = por %p142, %p143
      %p145 = scmp.ne.s32.totalorder %s134, %s137
      %p146 = scmp.eq.s32.totalorder %s19, 1
      %p147 = por %p145, %p146
      %p148 = scmp.ne.s32.totalorder %s137, %s138
      %p149 = scmp.eq.s32.totalorder %s19, 0
      %p150 = por %p148, %p149
      %p151 = scmp.ne.s32.totalorder %s137, %s138
      %p152 = scmp.eq.s32.totalorder %s20, 1
      %p153 = por %p151, %p152
      %p155 = scmp.ne.s32.totalorder %s138, %s154
      %p156 = scmp.eq.s32.totalorder %s20, 0
      %p157 = por %p155, %p156
      %p158 = scmp.le.s32.totalorder 1, %s14
      %p159 = scmp.lt.s32.totalorder %s14, 3
      %p160 = pnand %p158, %p159
      %p161 = pneg %p160
      // Predicated region
      $region9: #{tpu_custom_call.1} parent=5 // pred_check
        _
      $region10: #{tpu_custom_call.1} parent=5 // pred_check_branch
        %163 = sbr.rel (%p160) target = $region12
      $region11: #{tpu_custom_call.1} parent=5 // pred_region
        %s164 = ssub.s32 %s14, 1
        // Predicated region
        $region13: #{tpu_custom_call.1} parent=11 // pred_check
          %p165 = pneg %p61
        $region14: #{tpu_custom_call.1} parent=11 // pred_check_branch
          %167 = sbr.rel (%p165) target = $region16
        $region15: #{tpu_custom_call.1} parent=11 // pred_region
          _
        $region16: #{tpu_custom_call.1} parent=11 // pred_fallthru
          _
        // Predicated region
        $region17: #{tpu_custom_call.1} parent=11 // pred_check
          %p168 = pneg %p82
        $region18: #{tpu_custom_call.1} parent=11 // pred_check_branch
          %170 = sbr.rel (%p168) target = $region20
        $region19: #{tpu_custom_call.1} parent=11 // pred_region
          _
        $region20: #{tpu_custom_call.1} parent=11 // pred_fallthru
          _
        // Predicated region
        $region21: #{tpu_custom_call.1} parent=11 // pred_check
          %p171 = pneg %p103
        $region22: #{tpu_custom_call.1} parent=11 // pred_check_branch
          %173 = sbr.rel (%p171) target = $region24
        $region23: #{tpu_custom_call.1} parent=11 // pred_region
          _
        $region24: #{tpu_custom_call.1} parent=11 // pred_fallthru
          _
        // Predicated region
        $region25: #{tpu_custom_call.1} parent=11 // pred_check
          %p174 = pneg %p124
        $region26: #{tpu_custom_call.1} parent=11 // pred_check_branch
          %176 = sbr.rel (%p174) target = $region28
        $region27: #{tpu_custom_call.1} parent=11 // pred_region
          _
        $region28: #{tpu_custom_call.1} parent=11 // pred_fallthru
          _
      $region12: #{tpu_custom_call.1} parent=5 // pred_fallthru
        _
      %p177 = scmp.lt.s32.totalorder %s14, 2
      // Predicated region
      $region29: #{tpu_custom_call.1} parent=5 // pred_check
        %p178 = pneg %p177
      $region30: #{tpu_custom_call.1} parent=5 // pred_check_branch
        %180 = sbr.rel (%p178) target = $region32
      $region31: #{tpu_custom_call.1} parent=5 // pred_region
        // Predicated region
        $region33: #{tpu_custom_call.1} parent=31 // pred_check
          %p181 = pneg %p34
        $region34: #{tpu_custom_call.1} parent=31 // pred_check_branch
          %183 = sbr.rel (%p181) target = $region36
        $region35: #{tpu_custom_call.1} parent=31 // pred_region
          %p184 = scmp.lt.s32.totalorder %s14, 1
          %s185 = scalar_select %p184, %s14, 1
          %s186 = smul.addr %s185, 3
          %s187 = smul.addr %s186, 4
          %s188 = scalar_lea.vmem %s0, %s187
        $region36: #{tpu_custom_call.1} parent=31 // pred_fallthru
          _
      $region32: #{tpu_custom_call.1} parent=5 // pred_fallthru
        _
      %p189 = scmp.le.s32.totalorder 1, %s14
      %p190 = scmp.lt.s32.totalorder %s14, 3
      %p191 = pnand %p189, %p190
      %p192 = pneg %p191
      // Predicated region
      $region37: #{tpu_custom_call.1} parent=5 // pred_check
        _
      $region38: #{tpu_custom_call.1} parent=5 // pred_check_branch
        %194 = sbr.rel (%p191) target = $region40
      $region39: #{tpu_custom_call.1} parent=5 // pred_region
        %s195 = ssub.s32 %s14, 1
        %p196 = scmp.lt.s32.totalorder %s19, 1
        %s197 = scalar_select %p196, %s19, 1
        %s198 = smul.addr %s197, 3
        %s199 = smul.addr %s198, 4
        %s200 = scalar_lea.vmem %s0, %s199
        %p201 = pneg %p40
        %p202 = pneg %p37
        %p203 = pneg %p61
        %p204 = pneg %p58
        %p205 = pneg %p82
        %p206 = pneg %p79
        %p207 = pneg %p103
        %p208 = pneg %p100
        %p209 = pneg %p124
        %p210 = pneg %p121
        %p211 = pneg %p150
        %p212 = pneg %p147
        %s213 = sand.u32 %s137, 1
        %s214 = scalar_lea.sflag [#allocation3], %s213
        %s215 = sand.u32 %s137, 1
        %s216 = smul.addr %s215, 24
        %s217 = scalar_lea.vmem [#allocation2], %s216
        %p218 = scmp.lt.s32.totalorder %s19, 1
        %s219 = scalar_select %p218, %s19, 1
        %s220 = smul.addr %s219, 3
        %s221 = smul.addr %s220, 4
        %s222 = scalar_lea.vmem %s0, %s221
        %v223 = vld [vmem:[%s222] sm:$0xff]
        %v224 = vld [vmem:[%s222 + $0x8] sm:$0xf]
        %v225 = vld [vmem:[%s1] sm:$0xff]
        %s226 = scalar_lea.vmem %s1, 8
        %v227 = vld [vmem:[%s226] sm:$0xff]
        %v230 = vcombine.high %v223, %v223
        %231 = vrot.lane.b32.xlu0 %v223, 127
        %v232 = vpop.permute.xlu0 %231
        %233 = vrot.lane.b32.xlu0 %v230, 127
        %v234 = vpop.permute.xlu0 %233
        %235 = vrot.lane.b32.xlu0 %v224, 127
        %v236 = vpop.permute.xlu0 %235
        %vm237 = vcmask 1039360
        %v238 = vsel %vm237, %v232, %v234
        %v239 = vsel %vm237, %v234, %v236
        %vm240 = vcmask 31744
        %v242 = vsel %vm240, %v227, 0
        %vm244 = vcmask 1043456
        %v245 = vsel %vm244, %v238, 0
        %v247 = vsel %vm244, %v239, 0
        %v249 = vsel %vm244, %v236, 0
        %251 = vmatprep.subr.mxu0 %v247
        %252 = vmatpush1.msra.mxu0 %v245
        %253 = vmatprep.subr.mxu0 0.0
        %254 = vmatpush1.msra.mxu0 0.0
        %255 = vmatprep.subr.mxu0 0.0
        %256 = vmatpush1.msra.mxu0 0.0
        %257 = vmatprep.subr.mxu0 0.0
        %258 = vmatpush1.msra.mxu0 0.0
        %259 = vmatprep.subr.mxu0 0.0
        %260 = vmatpush1.msra.mxu0 0.0
        %261 = vmatprep.subr.mxu0 0.0
        %262 = vmatpush1.msra.mxu0 0.0
        %263 = vmatprep.subr.mxu0 0.0
        %264 = vmatpush1.msra.mxu0 0.0
        %265 = vmatprep.subr.mxu0 0.0
        %266 = vmatpush1.msra.mxu0 0.0
        %267 = vmatprep.subr.mxu0 0.0
        %268 = vmatpush1.msra.mxu0 0.0
        %269 = vmatprep.subr.mxu0 0.0
        %270 = vmatpush1.msra.mxu0 0.0
        %271 = vmatprep.subr.mxu0 0.0
        %272 = vmatpush1.msra.mxu0 0.0
        %273 = vmatprep.subr.mxu0 0.0
        %274 = vmatpush1.msra.mxu0 0.0
        %275 = vmatprep.subr.mxu0 0.0
        %276 = vmatpush1.msra.mxu0 0.0
        %277 = vmatprep.subr.mxu0 0.0
        %278 = vmatpush1.msra.mxu0 0.0
        %279 = vmatprep.subr.mxu0 0.0
        %280 = vmatpush1.msra.mxu0 0.0
        %281 = vmatprep.subr.mxu0 0.0
        %282 = vmatpush1.msra.mxu0 0.0
        %283 = vmatprep.subr.mxu0 0.0
        %284 = vmatpush1.msra.mxu0 0.0
        %285 = vmatprep.subr.mxu0 0.0
        %286 = vmatpush1.msra.mxu0 0.0
        %287 = vmatprep.subr.mxu0 0.0
        %288 = vmatpush1.msra.mxu0 0.0
        %289 = vmatprep.subr.mxu0 0.0
        %290 = vmatpush1.msra.mxu0 0.0
        %291 = vmatprep.subr.mxu0 0.0
        %292 = vmatpush1.msra.mxu0 0.0
        %293 = vmatprep.subr.mxu0 0.0
        %294 = vmatpush1.msra.mxu0 0.0
        %295 = vmatprep.subr.mxu0 0.0
        %296 = vmatpush1.msra.mxu0 0.0
        %297 = vmatprep.subr.mxu0 0.0
        %298 = vmatpush1.msra.mxu0 0.0
        %299 = vmatprep.subr.mxu0 0.0
        %300 = vmatpush1.msra.mxu0 0.0
        %301 = vmatprep.subr.mxu0 0.0
        %302 = vmatpush1.msra.mxu0 0.0
        %303 = vmatprep.subr.mxu0 0.0
        %304 = vmatpush1.msra.mxu0 0.0
        %305 = vmatprep.subr.mxu0 0.0
        %306 = vmatpush1.msra.mxu0 0.0
        %307 = vmatprep.subr.mxu0 0.0
        %308 = vmatpush1.msra.mxu0 0.0
        %309 = vmatprep.subr.mxu0 0.0
        %310 = vmatpush1.msra.mxu0 0.0
        %311 = vmatprep.subr.mxu0 0.0
        %312 = vmatpush1.msra.mxu0 0.0
        %313 = vmatprep.subr.mxu0 0.0
        %314 = vmatpush1.msra.mxu0 0.0
        %315 = vmatprep.mubr.f32.mxu0 0.0
        %316 = vmatmul.mubr.f32.gmra.mrb[0].mxu0 %v242
        %v317 = vpop.f32.mrb[0].mxu0
        %v318 = vadd.f32 0.0, %v317
        %v319 = vpop.f32.mrb[0].mxu0
        %v320 = vadd.f32 0.0, %v319
        %321 = vdwg.mxu0
        %322 = vmatprep.subr.mxu0 0.0
        %323 = vmatpush1.msra.mxu0 %v249
        %324 = vmatprep.subr.mxu0 0.0
        %325 = vmatpush1.msra.mxu0 0.0
        %326 = vmatprep.subr.mxu0 0.0
        %327 = vmatpush1.msra.mxu0 0.0
        %328 = vmatprep.subr.mxu0 0.0
        %329 = vmatpush1.msra.mxu0 0.0
        %330 = vmatprep.subr.mxu0 0.0
        %331 = vmatpush1.msra.mxu0 0.0
        %332 = vmatprep.subr.mxu0 0.0
        %333 = vmatpush1.msra.mxu0 0.0
        %334 = vmatprep.subr.mxu0 0.0
        %335 = vmatpush1.msra.mxu0 0.0
        %336 = vmatprep.subr.mxu0 0.0
        %337 = vmatpush1.msra.mxu0 0.0
        %338 = vmatprep.subr.mxu0 0.0
        %339 = vmatpush1.msra.mxu0 0.0
        %340 = vmatprep.subr.mxu0 0.0
        %341 = vmatpush1.msra.mxu0 0.0
        %342 = vmatprep.subr.mxu0 0.0
        %343 = vmatpush1.msra.mxu0 0.0
        %344 = vmatprep.subr.mxu0 0.0
        %345 = vmatpush1.msra.mxu0 0.0
        %346 = vmatprep.subr.mxu0 0.0
        %347 = vmatpush1.msra.mxu0 0.0
        %348 = vmatprep.subr.mxu0 0.0
        %349 = vmatpush1.msra.mxu0 0.0
        %350 = vmatprep.subr.mxu0 0.0
        %351 = vmatpush1.msra.mxu0 0.0
        %352 = vmatprep.subr.mxu0 0.0
        %353 = vmatpush1.msra.mxu0 0.0
        %354 = vmatprep.subr.mxu0 0.0
        %355 = vmatpush1.msra.mxu0 0.0
        %356 = vmatprep.subr.mxu0 0.0
        %357 = vmatpush1.msra.mxu0 0.0
        %358 = vmatprep.subr.mxu0 0.0
        %359 = vmatpush1.msra.mxu0 0.0
        %360 = vmatprep.subr.mxu0 0.0
        %361 = vmatpush1.msra.mxu0 0.0
        %362 = vmatprep.subr.mxu0 0.0
        %363 = vmatpush1.msra.mxu0 0.0
        %364 = vmatprep.subr.mxu0 0.0
        %365 = vmatpush1.msra.mxu0 0.0
        %366 = vmatprep.subr.mxu0 0.0
        %367 = vmatpush1.msra.mxu0 0.0
        %368 = vmatprep.subr.mxu0 0.0
        %369 = vmatpush1.msra.mxu0 0.0
        %370 = vmatprep.subr.mxu0 0.0
        %371 = vmatpush1.msra.mxu0 0.0
        %372 = vmatprep.subr.mxu0 0.0
        %373 = vmatpush1.msra.mxu0 0.0
        %374 = vmatprep.subr.mxu0 0.0
        %375 = vmatpush1.msra.mxu0 0.0
        %376 = vmatprep.subr.mxu0 0.0
        %377 = vmatpush1.msra.mxu0 0.0
        %378 = vmatprep.subr.mxu0 0.0
        %379 = vmatpush1.msra.mxu0 0.0
        %380 = vmatprep.subr.mxu0 0.0
        %381 = vmatpush1.msra.mxu0 0.0
        %382 = vmatprep.subr.mxu0 0.0
        %383 = vmatpush1.msra.mxu0 0.0
        %384 = vmatprep.subr.mxu0 0.0
        %385 = vmatpush1.msra.mxu0 0.0
        %386 = vmatprep.mubr.f32.mxu0 0.0
        %387 = vmatmul.mubr.f32.gmra.mrb[0].mxu0 %v242
        %v388 = vpop.f32.mrb[0].mxu0
        %v389 = vadd.f32 0.0, %v388
        %v390 = vpop.f32.mrb[0].mxu0
        %391 = vdwg.mxu0
        %v393 = vsel %vm240, %v225, 0
        %v395 = vsel %vm244, %v223, 0
        %v397 = vsel %vm244, %v230, 0
        %v399 = vsel %vm244, %v224, 0
        %401 = vmatprep.subr.mxu0 %v397
        %402 = vmatpush1.msra.mxu0 %v395
        %403 = vmatprep.subr.mxu0 0.0
        %404 = vmatpush1.msra.mxu0 0.0
        %405 = vmatprep.subr.mxu0 0.0
        %406 = vmatpush1.msra.mxu0 0.0
        %407 = vmatprep.subr.mxu0 0.0
        %408 = vmatpush1.msra.mxu0 0.0
        %409 = vmatprep.subr.mxu0 0.0
        %410 = vmatpush1.msra.mxu0 0.0
        %411 = vmatprep.subr.mxu0 0.0
        %412 = vmatpush1.msra.mxu0 0.0
        %413 = vmatprep.subr.mxu0 0.0
        %414 = vmatpush1.msra.mxu0 0.0
        %415 = vmatprep.subr.mxu0 0.0
        %416 = vmatpush1.msra.mxu0 0.0
        %417 = vmatprep.subr.mxu0 0.0
        %418 = vmatpush1.msra.mxu0 0.0
        %419 = vmatprep.subr.mxu0 0.0
        %420 = vmatpush1.msra.mxu0 0.0
        %421 = vmatprep.subr.mxu0 0.0
        %422 = vmatpush1.msra.mxu0 0.0
        %423 = vmatprep.subr.mxu0 0.0
        %424 = vmatpush1.msra.mxu0 0.0
        %425 = vmatprep.subr.mxu0 0.0
        %426 = vmatpush1.msra.mxu0 0.0
        %427 = vmatprep.subr.mxu0 0.0
        %428 = vmatpush1.msra.mxu0 0.0
        %429 = vmatprep.subr.mxu0 0.0
        %430 = vmatpush1.msra.mxu0 0.0
        %431 = vmatprep.subr.mxu0 0.0
        %432 = vmatpush1.msra.mxu0 0.0
        %433 = vmatprep.subr.mxu0 0.0
        %434 = vmatpush1.msra.mxu0 0.0
        %435 = vmatprep.subr.mxu0 0.0
        %436 = vmatpush1.msra.mxu0 0.0
        %437 = vmatprep.subr.mxu0 0.0
        %438 = vmatpush1.msra.mxu0 0.0
        %439 = vmatprep.subr.mxu0 0.0
        %440 = vmatpush1.msra.mxu0 0.0
        %441 = vmatprep.subr.mxu0 0.0
        %442 = vmatpush1.msra.mxu0 0.0
        %443 = vmatprep.subr.mxu0 0.0
        %444 = vmatpush1.msra.mxu0 0.0
        %445 = vmatprep.subr.mxu0 0.0
        %446 = vmatpush1.msra.mxu0 0.0
        %447 = vmatprep.subr.mxu0 0.0
        %448 = vmatpush1.msra.mxu0 0.0
        %449 = vmatprep.subr.mxu0 0.0
        %450 = vmatpush1.msra.mxu0 0.0
        %451 = vmatprep.subr.mxu0 0.0
        %452 = vmatpush1.msra.mxu0 0.0
        %453 = vmatprep.subr.mxu0 0.0
        %454 = vmatpush1.msra.mxu0 0.0
        %455 = vmatprep.subr.mxu0 0.0
        %456 = vmatpush1.msra.mxu0 0.0
        %457 = vmatprep.subr.mxu0 0.0
        %458 = vmatpush1.msra.mxu0 0.0
        %459 = vmatprep.subr.mxu0 0.0
        %460 = vmatpush1.msra.mxu0 0.0
        %461 = vmatprep.subr.mxu0 0.0
        %462 = vmatpush1.msra.mxu0 0.0
        %463 = vmatprep.subr.mxu0 0.0
        %464 = vmatpush1.msra.mxu0 0.0
        %465 = vmatprep.mubr.f32.mxu0 0.0
        %466 = vmatmul.mubr.f32.gmra.mrb[0].mxu0 %v393
        %v467 = vpop.f32.mrb[0].mxu0
        %v468 = vadd.f32 %v318, %v467
        %v469 = vpop.f32.mrb[0].mxu0
        %v470 = vadd.f32 %v320, %v469
        %471 = vdwg.mxu0
        %472 = vmatprep.subr.mxu0 0.0
        %473 = vmatpush1.msra.mxu0 %v399
        %474 = vmatprep.subr.mxu0 0.0
        %475 = vmatpush1.msra.mxu0 0.0
        %476 = vmatprep.subr.mxu0 0.0
        %477 = vmatpush1.msra.mxu0 0.0
        %478 = vmatprep.subr.mxu0 0.0
        %479 = vmatpush1.msra.mxu0 0.0
        %480 = vmatprep.subr.mxu0 0.0
        %481 = vmatpush1.msra.mxu0 0.0
        %482 = vmatprep.subr.mxu0 0.0
        %483 = vmatpush1.msra.mxu0 0.0
        %484 = vmatprep.subr.mxu0 0.0
        %485 = vmatpush1.msra.mxu0 0.0
        %486 = vmatprep.subr.mxu0 0.0
        %487 = vmatpush1.msra.mxu0 0.0
        %488 = vmatprep.subr.mxu0 0.0
        %489 = vmatpush1.msra.mxu0 0.0
        %490 = vmatprep.subr.mxu0 0.0
        %491 = vmatpush1.msra.mxu0 0.0
        %492 = vmatprep.subr.mxu0 0.0
        %493 = vmatpush1.msra.mxu0 0.0
        %494 = vmatprep.subr.mxu0 0.0
        %495 = vmatpush1.msra.mxu0 0.0
        %496 = vmatprep.subr.mxu0 0.0
        %497 = vmatpush1.msra.mxu0 0.0
        %498 = vmatprep.subr.mxu0 0.0
        %499 = vmatpush1.msra.mxu0 0.0
        %500 = vmatprep.subr.mxu0 0.0
        %501 = vmatpush1.msra.mxu0 0.0
        %502 = vmatprep.subr.mxu0 0.0
        %503 = vmatpush1.msra.mxu0 0.0
        %504 = vmatprep.subr.mxu0 0.0
        %505 = vmatpush1.msra.mxu0 0.0
        %506 = vmatprep.subr.mxu0 0.0
        %507 = vmatpush1.msra.mxu0 0.0
        %508 = vmatprep.subr.mxu0 0.0
        %509 = vmatpush1.msra.mxu0 0.0
        %510 = vmatprep.subr.mxu0 0.0
        %511 = vmatpush1.msra.mxu0 0.0
        %512 = vmatprep.subr.mxu0 0.0
        %513 = vmatpush1.msra.mxu0 0.0
        %514 = vmatprep.subr.mxu0 0.0
        %515 = vmatpush1.msra.mxu0 0.0
        %516 = vmatprep.subr.mxu0 0.0
        %517 = vmatpush1.msra.mxu0 0.0
        %518 = vmatprep.subr.mxu0 0.0
        %519 = vmatpush1.msra.mxu0 0.0
        %520 = vmatprep.subr.mxu0 0.0
        %521 = vmatpush1.msra.mxu0 0.0
        %522 = vmatprep.subr.mxu0 0.0
        %523 = vmatpush1.msra.mxu0 0.0
        %524 = vmatprep.subr.mxu0 0.0
        %525 = vmatpush1.msra.mxu0 0.0
        %526 = vmatprep.subr.mxu0 0.0
        %527 = vmatpush1.msra.mxu0 0.0
        %528 = vmatprep.subr.mxu0 0.0
        %529 = vmatpush1.msra.mxu0 0.0
        %530 = vmatprep.subr.mxu0 0.0
        %531 = vmatpush1.msra.mxu0 0.0
        %532 = vmatprep.subr.mxu0 0.0
        %533 = vmatpush1.msra.mxu0 0.0
        %534 = vmatprep.subr.mxu0 0.0
        %535 = vmatpush1.msra.mxu0 0.0
        %536 = vmatprep.mubr.f32.mxu0 0.0
        %537 = vmatmul.mubr.f32.gmra.mrb[0].mxu0 %v393
        %v538 = vpop.f32.mrb[0].mxu0
        %v539 = vadd.f32 %v389, %v538
        %v540 = vpop.f32.mrb[0].mxu0
        %541 = vdwg.mxu0
        %v542 = vld [vmem:[%s222] sm:$0xff]
        %v543 = vld [vmem:[%s222 + $0x8] sm:$0xf]
        %s544 = scalar_lea.vmem %s1, 16
        %v545 = vld [vmem:[%s544] sm:$0xff]
        %v548 = vcombine.high %v542, %v542
        %549 = vrot.lane.b32.xlu0 %v542, 126
        %v550 = vpop.permute.xlu0 %549
        %551 = vrot.lane.b32.xlu0 %v548, 126
        %v552 = vpop.permute.xlu0 %551
        %553 = vrot.lane.b32.xlu0 %v543, 126
        %v554 = vpop.permute.xlu0 %553
        %vm555 = vcmask 1031168
        %v556 = vsel %vm555, %v550, %v552
        %v557 = vsel %vm555, %v552, %v554
        %v559 = vsel %vm240, %v545, 0
        %v561 = vsel %vm244, %v556, 0
        %v563 = vsel %vm244, %v557, 0
        %v565 = vsel %vm244, %v554, 0
        %567 = vmatprep.subr.mxu0 %v563
        %568 = vmatpush1.msra.mxu0 %v561
        %569 = vmatprep.subr.mxu0 0.0
        %570 = vmatpush1.msra.mxu0 0.0
        %571 = vmatprep.subr.mxu0 0.0
        %572 = vmatpush1.msra.mxu0 0.0
        %573 = vmatprep.subr.mxu0 0.0
        %574 = vmatpush1.msra.mxu0 0.0
        %575 = vmatprep.subr.mxu0 0.0
        %576 = vmatpush1.msra.mxu0 0.0
        %577 = vmatprep.subr.mxu0 0.0
        %578 = vmatpush1.msra.mxu0 0.0
        %579 = vmatprep.subr.mxu0 0.0
        %580 = vmatpush1.msra.mxu0 0.0
        %581 = vmatprep.subr.mxu0 0.0
        %582 = vmatpush1.msra.mxu0 0.0
        %583 = vmatprep.subr.mxu0 0.0
        %584 = vmatpush1.msra.mxu0 0.0
        %585 = vmatprep.subr.mxu0 0.0
        %586 = vmatpush1.msra.mxu0 0.0
        %587 = vmatprep.subr.mxu0 0.0
        %588 = vmatpush1.msra.mxu0 0.0
        %589 = vmatprep.subr.mxu0 0.0
        %590 = vmatpush1.msra.mxu0 0.0
        %591 = vmatprep.subr.mxu0 0.0
        %592 = vmatpush1.msra.mxu0 0.0
        %593 = vmatprep.subr.mxu0 0.0
        %594 = vmatpush1.msra.mxu0 0.0
        %595 = vmatprep.subr.mxu0 0.0
        %596 = vmatpush1.msra.mxu0 0.0
        %597 = vmatprep.subr.mxu0 0.0
        %598 = vmatpush1.msra.mxu0 0.0
        %599 = vmatprep.subr.mxu0 0.0
        %600 = vmatpush1.msra.mxu0 0.0
        %601 = vmatprep.subr.mxu0 0.0
        %602 = vmatpush1.msra.mxu0 0.0
        %603 = vmatprep.subr.mxu0 0.0
        %604 = vmatpush1.msra.mxu0 0.0
        %605 = vmatprep.subr.mxu0 0.0
        %606 = vmatpush1.msra.mxu0 0.0
        %607 = vmatprep.subr.mxu0 0.0
        %608 = vmatpush1.msra.mxu0 0.0
        %609 = vmatprep.subr.mxu0 0.0
        %610 = vmatpush1.msra.mxu0 0.0
        %611 = vmatprep.subr.mxu0 0.0
        %612 = vmatpush1.msra.mxu0 0.0
        %613 = vmatprep.subr.mxu0 0.0
        %614 = vmatpush1.msra.mxu0 0.0
        %615 = vmatprep.subr.mxu0 0.0
        %616 = vmatpush1.msra.mxu0 0.0
        %617 = vmatprep.subr.mxu0 0.0
        %618 = vmatpush1.msra.mxu0 0.0
        %619 = vmatprep.subr.mxu0 0.0
        %620 = vmatpush1.msra.mxu0 0.0
        %621 = vmatprep.subr.mxu0 0.0
        %622 = vmatpush1.msra.mxu0 0.0
        %623 = vmatprep.subr.mxu0 0.0
        %624 = vmatpush1.msra.mxu0 0.0
        %625 = vmatprep.subr.mxu0 0.0
        %626 = vmatpush1.msra.mxu0 0.0
        %627 = vmatprep.subr.mxu0 0.0
        %628 = vmatpush1.msra.mxu0 0.0
        %629 = vmatprep.subr.mxu0 0.0
        %630 = vmatpush1.msra.mxu0 0.0
        %631 = vmatprep.mubr.f32.mxu0 0.0
        %632 = vmatmul.mubr.f32.gmra.mrb[0].mxu0 %v559
        %v633 = vpop.f32.mrb[0].mxu0
        %v634 = vadd.f32 0.0, %v633
        %v635 = vpop.f32.mrb[0].mxu0
        %v636 = vadd.f32 0.0, %v635
        %637 = vdwg.mxu0
        %638 = vmatprep.subr.mxu0 0.0
        %639 = vmatpush1.msra.mxu0 %v565
        %640 = vmatprep.subr.mxu0 0.0
        %641 = vmatpush1.msra.mxu0 0.0
        %642 = vmatprep.subr.mxu0 0.0
        %643 = vmatpush1.msra.mxu0 0.0
        %644 = vmatprep.subr.mxu0 0.0
        %645 = vmatpush1.msra.mxu0 0.0
        %646 = vmatprep.subr.mxu0 0.0
        %647 = vmatpush1.msra.mxu0 0.0
        %648 = vmatprep.subr.mxu0 0.0
        %649 = vmatpush1.msra.mxu0 0.0
        %650 = vmatprep.subr.mxu0 0.0
        %651 = vmatpush1.msra.mxu0 0.0
        %652 = vmatprep.subr.mxu0 0.0
        %653 = vmatpush1.msra.mxu0 0.0
        %654 = vmatprep.subr.mxu0 0.0
        %655 = vmatpush1.msra.mxu0 0.0
        %656 = vmatprep.subr.mxu0 0.0
        %657 = vmatpush1.msra.mxu0 0.0
        %658 = vmatprep.subr.mxu0 0.0
        %659 = vmatpush1.msra.mxu0 0.0
        %660 = vmatprep.subr.mxu0 0.0
        %661 = vmatpush1.msra.mxu0 0.0
        %662 = vmatprep.subr.mxu0 0.0
        %663 = vmatpush1.msra.mxu0 0.0
        %664 = vmatprep.subr.mxu0 0.0
        %665 = vmatpush1.msra.mxu0 0.0
        %666 = vmatprep.subr.mxu0 0.0
        %667 = vmatpush1.msra.mxu0 0.0
        %668 = vmatprep.subr.mxu0 0.0
        %669 = vmatpush1.msra.mxu0 0.0
        %670 = vmatprep.subr.mxu0 0.0
        %671 = vmatpush1.msra.mxu0 0.0
        %672 = vmatprep.subr.mxu0 0.0
        %673 = vmatpush1.msra.mxu0 0.0
        %674 = vmatprep.subr.mxu0 0.0
        %675 = vmatpush1.msra.mxu0 0.0
        %676 = vmatprep.subr.mxu0 0.0
        %677 = vmatpush1.msra.mxu0 0.0
        %678 = vmatprep.subr.mxu0 0.0
        %679 = vmatpush1.msra.mxu0 0.0
        %680 = vmatprep.subr.mxu0 0.0
        %681 = vmatpush1.msra.mxu0 0.0
        %682 = vmatprep.subr.mxu0 0.0
        %683 = vmatpush1.msra.mxu0 0.0
        %684 = vmatprep.subr.mxu0 0.0
        %685 = vmatpush1.msra.mxu0 0.0
        %686 = vmatprep.subr.mxu0 0.0
        %687 = vmatpush1.msra.mxu0 0.0
        %688 = vmatprep.subr.mxu0 0.0
        %689 = vmatpush1.msra.mxu0 0.0
        %690 = vmatprep.subr.mxu0 0.0
        %691 = vmatpush1.msra.mxu0 0.0
        %692 = vmatprep.subr.mxu0 0.0
        %693 = vmatpush1.msra.mxu0 0.0
        %694 = vmatprep.subr.mxu0 0.0
        %695 = vmatpush1.msra.mxu0 0.0
        %696 = vmatprep.subr.mxu0 0.0
        %697 = vmatpush1.msra.mxu0 0.0
        %698 = vmatprep.subr.mxu0 0.0
        %699 = vmatpush1.msra.mxu0 0.0
        %700 = vmatprep.subr.mxu0 0.0
        %701 = vmatpush1.msra.mxu0 0.0
        %702 = vmatprep.mubr.f32.mxu0 0.0
        %703 = vmatmul.mubr.f32.gmra.mrb[0].mxu0 %v559
        %v704 = vpop.f32.mrb[0].mxu0
        %v705 = vadd.f32 0.0, %v704
        %v706 = vpop.f32.mrb[0].mxu0
        %707 = vdwg.mxu0
        %v708 = vadd.f32 %v468, %v634
        %v709 = vadd.f32 %v470, %v636
        %v710 = vadd.f32 %v539, %v705
        %v711 = vld [vmem:[%s222] sm:$0xff]
        %v712 = vld [vmem:[%s222 + $0x8] sm:$0xf]
        %s713 = scalar_lea.vmem %s1, 24
        %v714 = vld [vmem:[%s713] sm:$0xff]
        %v717 = vcombine.high %v711, %v711
        %718 = vrot.lane.b32.xlu0 %v711, 110
        %v719 = vpop.permute.xlu0 %718
        %720 = vrot.lane.b32.xlu0 %v717, 110
        %v721 = vpop.permute.xlu0 %720
        %722 = vrot.lane.b32.xlu0 %v712, 110
        %v723 = vpop.permute.xlu0 %722
        %vm724 = vcmask 900096
        %v725 = vsel %vm724, %v719, %v721
        %v726 = vsel %vm724, %v721, %v723
        %v728 = vsel %vm240, %v714, 0
        %v730 = vsel %vm244, %v725, 0
        %v732 = vsel %vm244, %v726, 0
        %v734 = vsel %vm244, %v723, 0
        %736 = vmatprep.subr.mxu0 %v732
        %737 = vmatpush1.msra.mxu0 %v730
        %738 = vmatprep.subr.mxu0 0.0
        %739 = vmatpush1.msra.mxu0 0.0
        %740 = vmatprep.subr.mxu0 0.0
        %741 = vmatpush1.msra.mxu0 0.0
        %742 = vmatprep.subr.mxu0 0.0
        %743 = vmatpush1.msra.mxu0 0.0
        %744 = vmatprep.subr.mxu0 0.0
        %745 = vmatpush1.msra.mxu0 0.0
        %746 = vmatprep.subr.mxu0 0.0
        %747 = vmatpush1.msra.mxu0 0.0
        %748 = vmatprep.subr.mxu0 0.0
        %749 = vmatpush1.msra.mxu0 0.0
        %750 = vmatprep.subr.mxu0 0.0
        %751 = vmatpush1.msra.mxu0 0.0
        %752 = vmatprep.subr.mxu0 0.0
        %753 = vmatpush1.msra.mxu0 0.0
        %754 = vmatprep.subr.mxu0 0.0
        %755 = vmatpush1.msra.mxu0 0.0
        %756 = vmatprep.subr.mxu0 0.0
        %757 = vmatpush1.msra.mxu0 0.0
        %758 = vmatprep.subr.mxu0 0.0
        %759 = vmatpush1.msra.mxu0 0.0
        %760 = vmatprep.subr.mxu0 0.0
        %761 = vmatpush1.msra.mxu0 0.0
        %762 = vmatprep.subr.mxu0 0.0
        %763 = vmatpush1.msra.mxu0 0.0
        %764 = vmatprep.subr.mxu0 0.0
        %765 = vmatpush1.msra.mxu0 0.0
        %766 = vmatprep.subr.mxu0 0.0
        %767 = vmatpush1.msra.mxu0 0.0
        %768 = vmatprep.subr.mxu0 0.0
        %769 = vmatpush1.msra.mxu0 0.0
        %770 = vmatprep.subr.mxu0 0.0
        %771 = vmatpush1.msra.mxu0 0.0
        %772 = vmatprep.subr.mxu0 0.0
        %773 = vmatpush1.msra.mxu0 0.0
        %774 = vmatprep.subr.mxu0 0.0
        %775 = vmatpush1.msra.mxu0 0.0
        %776 = vmatprep.subr.mxu0 0.0
        %777 = vmatpush1.msra.mxu0 0.0
        %778 = vmatprep.subr.mxu0 0.0
        %779 = vmatpush1.msra.mxu0 0.0
        %780 = vmatprep.subr.mxu0 0.0
        %781 = vmatpush1.msra.mxu0 0.0
        %782 = vmatprep.subr.mxu0 0.0
        %783 = vmatpush1.msra.mxu0 0.0
        %784 = vmatprep.subr.mxu0 0.0
        %785 = vmatpush1.msra.mxu0 0.0
        %786 = vmatprep.subr.mxu0 0.0
        %787 = vmatpush1.msra.mxu0 0.0
        %788 = vmatprep.subr.mxu0 0.0
        %789 = vmatpush1.msra.mxu0 0.0
        %790 = vmatprep.subr.mxu0 0.0
        %791 = vmatpush1.msra.mxu0 0.0
        %792 = vmatprep.subr.mxu0 0.0
        %793 = vmatpush1.msra.mxu0 0.0
        %794 = vmatprep.subr.mxu0 0.0
        %795 = vmatpush1.msra.mxu0 0.0
        %796 = vmatprep.subr.mxu0 0.0
        %797 = vmatpush1.msra.mxu0 0.0
        %798 = vmatprep.subr.mxu0 0.0
        %799 = vmatpush1.msra.mxu0 0.0
        %800 = vmatprep.mubr.f32.mxu0 0.0
        %801 = vmatmul.mubr.f32.gmra.mrb[0].mxu0 %v728
        %v802 = vpop.f32.mrb[0].mxu0
        %v803 = vadd.f32 0.0, %v802
        %v804 = vpop.f32.mrb[0].mxu0
        %v805 = vadd.f32 0.0, %v804
        %806 = vdwg.mxu0
        %807 = vmatprep.subr.mxu0 0.0
        %808 = vmatpush1.msra.mxu0 %v734
        %809 = vmatprep.subr.mxu0 0.0
        %810 = vmatpush1.msra.mxu0 0.0
        %811 = vmatprep.subr.mxu0 0.0
        %812 = vmatpush1.msra.mxu0 0.0
        %813 = vmatprep.subr.mxu0 0.0
        %814 = vmatpush1.msra.mxu0 0.0
        %815 = vmatprep.subr.mxu0 0.0
        %816 = vmatpush1.msra.mxu0 0.0
        %817 = vmatprep.subr.mxu0 0.0
        %818 = vmatpush1.msra.mxu0 0.0
        %819 = vmatprep.subr.mxu0 0.0
        %820 = vmatpush1.msra.mxu0 0.0
        %821 = vmatprep.subr.mxu0 0.0
        %822 = vmatpush1.msra.mxu0 0.0
        %823 = vmatprep.subr.mxu0 0.0
        %824 = vmatpush1.msra.mxu0 0.0
        %825 = vmatprep.subr.mxu0 0.0
        %826 = vmatpush1.msra.mxu0 0.0
        %827 = vmatprep.subr.mxu0 0.0
        %828 = vmatpush1.msra.mxu0 0.0
        %829 = vmatprep.subr.mxu0 0.0
        %830 = vmatpush1.msra.mxu0 0.0
        %831 = vmatprep.subr.mxu0 0.0
        %832 = vmatpush1.msra.mxu0 0.0
        %833 = vmatprep.subr.mxu0 0.0
        %834 = vmatpush1.msra.mxu0 0.0
        %835 = vmatprep.subr.mxu0 0.0
        %836 = vmatpush1.msra.mxu0 0.0
        %837 = vmatprep.subr.mxu0 0.0
        %838 = vmatpush1.msra.mxu0 0.0
        %839 = vmatprep.subr.mxu0 0.0
        %840 = vmatpush1.msra.mxu0 0.0
        %841 = vmatprep.subr.mxu0 0.0
        %842 = vmatpush1.msra.mxu0 0.0
        %843 = vmatprep.subr.mxu0 0.0
        %844 = vmatpush1.msra.mxu0 0.0
        %845 = vmatprep.subr.mxu0 0.0
        %846 = vmatpush1.msra.mxu0 0.0
        %847 = vmatprep.subr.mxu0 0.0
        %848 = vmatpush1.msra.mxu0 0.0
        %849 = vmatprep.subr.mxu0 0.0
        %850 = vmatpush1.msra.mxu0 0.0
        %851 = vmatprep.subr.mxu0 0.0
        %852 = vmatpush1.msra.mxu0 0.0
        %853 = vmatprep.subr.mxu0 0.0
        %854 = vmatpush1.msra.mxu0 0.0
        %855 = vmatprep.subr.mxu0 0.0
        %856 = vmatpush1.msra.mxu0 0.0
        %857 = vmatprep.subr.mxu0 0.0
        %858 = vmatpush1.msra.mxu0 0.0
        %859 = vmatprep.subr.mxu0 0.0
        %860 = vmatpush1.msra.mxu0 0.0
        %861 = vmatprep.subr.mxu0 0.0
        %862 = vmatpush1.msra.mxu0 0.0
        %863 = vmatprep.subr.mxu0 0.0
        %864 = vmatpush1.msra.mxu0 0.0
        %865 = vmatprep.subr.mxu0 0.0
        %866 = vmatpush1.msra.mxu0 0.0
        %867 = vmatprep.subr.mxu0 0.0
        %868 = vmatpush1.msra.mxu0 0.0
        %869 = vmatprep.subr.mxu0 0.0
        %870 = vmatpush1.msra.mxu0 0.0
        %871 = vmatprep.mubr.f32.mxu0 0.0
        %872 = vmatmul.mubr.f32.gmra.mrb[0].mxu0 %v728
        %v873 = vpop.f32.mrb[0].mxu0
        %v874 = vadd.f32 0.0, %v873
        %v875 = vpop.f32.mrb[0].mxu0
        %876 = vdwg.mxu0
        %v877 = vadd.f32 %v708, %v803
        %v878 = vadd.f32 %v709, %v805
        %v879 = vadd.f32 %v710, %v874
        %v880 = vld [vmem:[%s222] sm:$0xff]
        %v881 = vld [vmem:[%s222 + $0x8] sm:$0xf]
        %s882 = scalar_lea.vmem %s1, 32
        %v883 = vld [vmem:[%s882] sm:$0xff]
        %v886 = vcombine.high %v880, %v880
        %887 = vrot.lane.b32.xlu0 %v880, 109
        %v888 = vpop.permute.xlu0 %887
        %889 = vrot.lane.b32.xlu0 %v886, 109
        %v890 = vpop.permute.xlu0 %889
        %891 = vrot.lane.b32.xlu0 %v881, 109
        %v892 = vpop.permute.xlu0 %891
        %vm893 = vcmask 891904
        %v894 = vsel %vm893, %v888, %v890
        %v895 = vsel %vm893, %v890, %v892
        %v897 = vsel %vm240, %v883, 0
        %v899 = vsel %vm244, %v894, 0
        %v901 = vsel %vm244, %v895, 0
        %v903 = vsel %vm244, %v892, 0
        %905 = vmatprep.subr.mxu0 %v901
        %906 = vmatpush1.msra.mxu0 %v899
        %907 = vmatprep.subr.mxu0 0.0
        %908 = vmatpush1.msra.mxu0 0.0
        %909 = vmatprep.subr.mxu0 0.0
        %910 = vmatpush1.msra.mxu0 0.0
        %911 = vmatprep.subr.mxu0 0.0
        %912 = vmatpush1.msra.mxu0 0.0
        %913 = vmatprep.subr.mxu0 0.0
        %914 = vmatpush1.msra.mxu0 0.0
        %915 = vmatprep.subr.mxu0 0.0
        %916 = vmatpush1.msra.mxu0 0.0
        %917 = vmatprep.subr.mxu0 0.0
        %918 = vmatpush1.msra.mxu0 0.0
        %919 = vmatprep.subr.mxu0 0.0
        %920 = vmatpush1.msra.mxu0 0.0
        %921 = vmatprep.subr.mxu0 0.0
        %922 = vmatpush1.msra.mxu0 0.0
        %923 = vmatprep.subr.mxu0 0.0
        %924 = vmatpush1.msra.mxu0 0.0
        %925 = vmatprep.subr.mxu0 0.0
        %926 = vmatpush1.msra.mxu0 0.0
        %927 = vmatprep.subr.mxu0 0.0
        %928 = vmatpush1.msra.mxu0 0.0
        %929 = vmatprep.subr.mxu0 0.0
        %930 = vmatpush1.msra.mxu0 0.0
        %931 = vmatprep.subr.mxu0 0.0
        %932 = vmatpush1.msra.mxu0 0.0
        %933 = vmatprep.subr.mxu0 0.0
        %934 = vmatpush1.msra.mxu0 0.0
        %935 = vmatprep.subr.mxu0 0.0
        %936 = vmatpush1.msra.mxu0 0.0
        %937 = vmatprep.subr.mxu0 0.0
        %938 = vmatpush1.msra.mxu0 0.0
        %939 = vmatprep.subr.mxu0 0.0
        %940 = vmatpush1.msra.mxu0 0.0
        %941 = vmatprep.subr.mxu0 0.0
        %942 = vmatpush1.msra.mxu0 0.0
        %943 = vmatprep.subr.mxu0 0.0
        %944 = vmatpush1.msra.mxu0 0.0
        %945 = vmatprep.subr.mxu0 0.0
        %946 = vmatpush1.msra.mxu0 0.0
        %947 = vmatprep.subr.mxu0 0.0
        %948 = vmatpush1.msra.mxu0 0.0
        %949 = vmatprep.subr.mxu0 0.0
        %950 = vmatpush1.msra.mxu0 0.0
        %951 = vmatprep.subr.mxu0 0.0
        %952 = vmatpush1.msra.mxu0 0.0
        %953 = vmatprep.subr.mxu0 0.0
        %954 = vmatpush1.msra.mxu0 0.0
        %955 = vmatprep.subr.mxu0 0.0
        %956 = vmatpush1.msra.mxu0 0.0
        %957 = vmatprep.subr.mxu0 0.0
        %958 = vmatpush1.msra.mxu0 0.0
        %959 = vmatprep.subr.mxu0 0.0
        %960 = vmatpush1.msra.mxu0 0.0
        %961 = vmatprep.subr.mxu0 0.0
        %962 = vmatpush1.msra.mxu0 0.0
        %963 = vmatprep.subr.mxu0 0.0
        %964 = vmatpush1.msra.mxu0 0.0
        %965 = vmatprep.subr.mxu0 0.0
        %966 = vmatpush1.msra.mxu0 0.0
        %967 = vmatprep.subr.mxu0 0.0
        %968 = vmatpush1.msra.mxu0 0.0
        %969 = vmatprep.mubr.f32.mxu0 0.0
        %970 = vmatmul.mubr.f32.gmra.mrb[0].mxu0 %v897
        %v971 = vpop.f32.mrb[0].mxu0
        %v972 = vadd.f32 0.0, %v971
        %v973 = vpop.f32.mrb[0].mxu0
        %v974 = vadd.f32 0.0, %v973
        %975 = vdwg.mxu0
        %976 = vmatprep.subr.mxu0 0.0
        %977 = vmatpush1.msra.mxu0 %v903
        %978 = vmatprep.subr.mxu0 0.0
        %979 = vmatpush1.msra.mxu0 0.0
        %980 = vmatprep.subr.mxu0 0.0
        %981 = vmatpush1.msra.mxu0 0.0
        %982 = vmatprep.subr.mxu0 0.0
        %983 = vmatpush1.msra.mxu0 0.0
        %984 = vmatprep.subr.mxu0 0.0
        %985 = vmatpush1.msra.mxu0 0.0
        %986 = vmatprep.subr.mxu0 0.0
        %987 = vmatpush1.msra.mxu0 0.0
        %988 = vmatprep.subr.mxu0 0.0
        %989 = vmatpush1.msra.mxu0 0.0
        %990 = vmatprep.subr.mxu0 0.0
        %991 = vmatpush1.msra.mxu0 0.0
        %992 = vmatprep.subr.mxu0 0.0
        %993 = vmatpush1.msra.mxu0 0.0
        %994 = vmatprep.subr.mxu0 0.0
        %995 = vmatpush1.msra.mxu0 0.0
        %996 = vmatprep.subr.mxu0 0.0
        %997 = vmatpush1.msra.mxu0 0.0
        %998 = vmatprep.subr.mxu0 0.0
        %999 = vmatpush1.msra.mxu0 0.0
        %1000 = vmatprep.subr.mxu0 0.0
        %1001 = vmatpush1.msra.mxu0 0.0
        %1002 = vmatprep.subr.mxu0 0.0
        %1003 = vmatpush1.msra.mxu0 0.0
        %1004 = vmatprep.subr.mxu0 0.0
        %1005 = vmatpush1.msra.mxu0 0.0
        %1006 = vmatprep.subr.mxu0 0.0
        %1007 = vmatpush1.msra.mxu0 0.0
        %1008 = vmatprep.subr.mxu0 0.0
        %1009 = vmatpush1.msra.mxu0 0.0
        %1010 = vmatprep.subr.mxu0 0.0
        %1011 = vmatpush1.msra.mxu0 0.0
        %1012 = vmatprep.subr.mxu0 0.0
        %1013 = vmatpush1.msra.mxu0 0.0
        %1014 = vmatprep.subr.mxu0 0.0
        %1015 = vmatpush1.msra.mxu0 0.0
        %1016 = vmatprep.subr.mxu0 0.0
        %1017 = vmatpush1.msra.mxu0 0.0
        %1018 = vmatprep.subr.mxu0 0.0
        %1019 = vmatpush1.msra.mxu0 0.0
        %1020 = vmatprep.subr.mxu0 0.0
        %1021 = vmatpush1.msra.mxu0 0.0
        %1022 = vmatprep.subr.mxu0 0.0
        %1023 = vmatpush1.msra.mxu0 0.0
        %1024 = vmatprep.subr.mxu0 0.0
        %1025 = vmatpush1.msra.mxu0 0.0
        %1026 = vmatprep.subr.mxu0 0.0
        %1027 = vmatpush1.msra.mxu0 0.0
        %1028 = vmatprep.subr.mxu0 0.0
        %1029 = vmatpush1.msra.mxu0 0.0
        %1030 = vmatprep.subr.mxu0 0.0
        %1031 = vmatpush1.msra.mxu0 0.0
        %1032 = vmatprep.subr.mxu0 0.0
        %1033 = vmatpush1.msra.mxu0 0.0
        %1034 = vmatprep.subr.mxu0 0.0
        %1035 = vmatpush1.msra.mxu0 0.0
        %1036 = vmatprep.subr.mxu0 0.0
        %1037 = vmatpush1.msra.mxu0 0.0
        %1038 = vmatprep.subr.mxu0 0.0
        %1039 = vmatpush1.msra.mxu0 0.0
        %1040 = vmatprep.mubr.f32.mxu0 0.0
        %1041 = vmatmul.mubr.f32.gmra.mrb[0].mxu0 %v897
        %v1042 = vpop.f32.mrb[0].mxu0
        %v1043 = vadd.f32 0.0, %v1042
        %v1044 = vpop.f32.mrb[0].mxu0
        %1045 = vdwg.mxu0
        %v1046 = vadd.f32 %v877, %v972
        %v1047 = vadd.f32 %v878, %v974
        %v1048 = vadd.f32 %v879, %v1043
        %v1049 = vld [vmem:[%s222] sm:$0xff]
        %v1050 = vld [vmem:[%s222 + $0x8] sm:$0xf]
        %s1051 = scalar_lea.vmem %s1, 40
        %v1052 = vld [vmem:[%s1051] sm:$0xff]
        %v1055 = vcombine.high %v1049, %v1049
        %1056 = vrot.lane.b32.xlu0 %v1049, 108
        %v1057 = vpop.permute.xlu0 %1056
        %1058 = vrot.lane.b32.xlu0 %v1055, 108
        %v1059 = vpop.permute.xlu0 %1058
        %1060 = vrot.lane.b32.xlu0 %v1050, 108
        %v1061 = vpop.permute.xlu0 %1060
        %vm1062 = vcmask 883712
        %v1063 = vsel %vm1062, %v1057, %v1059
        %v1064 = vsel %vm1062, %v1059, %v1061
        %v1066 = vsel %vm240, %v1052, 0
        %v1068 = vsel %vm244, %v1063, 0
        %v1070 = vsel %vm244, %v1064, 0
        %v1072 = vsel %vm244, %v1061, 0
        %1074 = vmatprep.subr.mxu0 %v1070
        %1075 = vmatpush1.msra.mxu0 %v1068
        %1076 = vmatprep.subr.mxu0 0.0
        %1077 = vmatpush1.msra.mxu0 0.0
        %1078 = vmatprep.subr.mxu0 0.0
        %1079 = vmatpush1.msra.mxu0 0.0
        %1080 = vmatprep.subr.mxu0 0.0
        %1081 = vmatpush1.msra.mxu0 0.0
        %1082 = vmatprep.subr.mxu0 0.0
        %1083 = vmatpush1.msra.mxu0 0.0
        %1084 = vmatprep.subr.mxu0 0.0
        %1085 = vmatpush1.msra.mxu0 0.0
        %1086 = vmatprep.subr.mxu0 0.0
        %1087 = vmatpush1.msra.mxu0 0.0
        %1088 = vmatprep.subr.mxu0 0.0
        %1089 = vmatpush1.msra.mxu0 0.0
        %1090 = vmatprep.subr.mxu0 0.0
        %1091 = vmatpush1.msra.mxu0 0.0
        %1092 = vmatprep.subr.mxu0 0.0
        %1093 = vmatpush1.msra.mxu0 0.0
        %1094 = vmatprep.subr.mxu0 0.0
        %1095 = vmatpush1.msra.mxu0 0.0
        %1096 = vmatprep.subr.mxu0 0.0
        %1097 = vmatpush1.msra.mxu0 0.0
        %1098 = vmatprep.subr.mxu0 0.0
        %1099 = vmatpush1.msra.mxu0 0.0
        %1100 = vmatprep.subr.mxu0 0.0
        %1101 = vmatpush1.msra.mxu0 0.0
        %1102 = vmatprep.subr.mxu0 0.0
        %1103 = vmatpush1.msra.mxu0 0.0
        %1104 = vmatprep.subr.mxu0 0.0
        %1105 = vmatpush1.msra.mxu0 0.0
        %1106 = vmatprep.subr.mxu0 0.0
        %1107 = vmatpush1.msra.mxu0 0.0
        %1108 = vmatprep.subr.mxu0 0.0
        %1109 = vmatpush1.msra.mxu0 0.0
        %1110 = vmatprep.subr.mxu0 0.0
        %1111 = vmatpush1.msra.mxu0 0.0
        %1112 = vmatprep.subr.mxu0 0.0
        %1113 = vmatpush1.msra.mxu0 0.0
        %1114 = vmatprep.subr.mxu0 0.0
        %1115 = vmatpush1.msra.mxu0 0.0
        %1116 = vmatprep.subr.mxu0 0.0
        %1117 = vmatpush1.msra.mxu0 0.0
        %1118 = vmatprep.subr.mxu0 0.0
        %1119 = vmatpush1.msra.mxu0 0.0
        %1120 = vmatprep.subr.mxu0 0.0
        %1121 = vmatpush1.msra.mxu0 0.0
        %1122 = vmatprep.subr.mxu0 0.0
        %1123 = vmatpush1.msra.mxu0 0.0
        %1124 = vmatprep.subr.mxu0 0.0
        %1125 = vmatpush1.msra.mxu0 0.0
        %1126 = vmatprep.subr.mxu0 0.0
        %1127 = vmatpush1.msra.mxu0 0.0
        %1128 = vmatprep.subr.mxu0 0.0
        %1129 = vmatpush1.msra.mxu0 0.0
        %1130 = vmatprep.subr.mxu0 0.0
        %1131 = vmatpush1.msra.mxu0 0.0
        %1132 = vmatprep.subr.mxu0 0.0
        %1133 = vmatpush1.msra.mxu0 0.0
        %1134 = vmatprep.subr.mxu0 0.0
        %1135 = vmatpush1.msra.mxu0 0.0
        %1136 = vmatprep.subr.mxu0 0.0
        %1137 = vmatpush1.msra.mxu0 0.0
        %1138 = vmatprep.mubr.f32.mxu0 0.0
        %1139 = vmatmul.mubr.f32.gmra.mrb[0].mxu0 %v1066
        %v1140 = vpop.f32.mrb[0].mxu0
        %v1141 = vadd.f32 0.0, %v1140
        %v1142 = vpop.f32.mrb[0].mxu0
        %v1143 = vadd.f32 0.0, %v1142
        %1144 = vdwg.mxu0
        %1145 = vmatprep.subr.mxu0 0.0
        %1146 = vmatpush1.msra.mxu0 %v1072
        %1147 = vmatprep.subr.mxu0 0.0
        %1148 = vmatpush1.msra.mxu0 0.0
        %1149 = vmatprep.subr.mxu0 0.0
        %1150 = vmatpush1.msra.mxu0 0.0
        %1151 = vmatprep.subr.mxu0 0.0
        %1152 = vmatpush1.msra.mxu0 0.0
        %1153 = vmatprep.subr.mxu0 0.0
        %1154 = vmatpush1.msra.mxu0 0.0
        %1155 = vmatprep.subr.mxu0 0.0
        %1156 = vmatpush1.msra.mxu0 0.0
        %1157 = vmatprep.subr.mxu0 0.0
        %1158 = vmatpush1.msra.mxu0 0.0
        %1159 = vmatprep.subr.mxu0 0.0
        %1160 = vmatpush1.msra.mxu0 0.0
        %1161 = vmatprep.subr.mxu0 0.0
        %1162 = vmatpush1.msra.mxu0 0.0
        %1163 = vmatprep.subr.mxu0 0.0
        %1164 = vmatpush1.msra.mxu0 0.0
        %1165 = vmatprep.subr.mxu0 0.0
        %1166 = vmatpush1.msra.mxu0 0.0
        %1167 = vmatprep.subr.mxu0 0.0
        %1168 = vmatpush1.msra.mxu0 0.0
        %1169 = vmatprep.subr.mxu0 0.0
        %1170 = vmatpush1.msra.mxu0 0.0
        %1171 = vmatprep.subr.mxu0 0.0
        %1172 = vmatpush1.msra.mxu0 0.0
        %1173 = vmatprep.subr.mxu0 0.0
        %1174 = vmatpush1.msra.mxu0 0.0
        %1175 = vmatprep.subr.mxu0 0.0
        %1176 = vmatpush1.msra.mxu0 0.0
        %1177 = vmatprep.subr.mxu0 0.0
        %1178 = vmatpush1.msra.mxu0 0.0
        %1179 = vmatprep.subr.mxu0 0.0
        %1180 = vmatpush1.msra.mxu0 0.0
        %1181 = vmatprep.subr.mxu0 0.0
        %1182 = vmatpush1.msra.mxu0 0.0
        %1183 = vmatprep.subr.mxu0 0.0
        %1184 = vmatpush1.msra.mxu0 0.0
        %1185 = vmatprep.subr.mxu0 0.0
        %1186 = vmatpush1.msra.mxu0 0.0
        %1187 = vmatprep.subr.mxu0 0.0
        %1188 = vmatpush1.msra.mxu0 0.0
        %1189 = vmatprep.subr.mxu0 0.0
        %1190 = vmatpush1.msra.mxu0 0.0
        %1191 = vmatprep.subr.mxu0 0.0
        %1192 = vmatpush1.msra.mxu0 0.0
        %1193 = vmatprep.subr.mxu0 0.0
        %1194 = vmatpush1.msra.mxu0 0.0
        %1195 = vmatprep.subr.mxu0 0.0
        %1196 = vmatpush1.msra.mxu0 0.0
        %1197 = vmatprep.subr.mxu0 0.0
        %1198 = vmatpush1.msra.mxu0 0.0
        %1199 = vmatprep.subr.mxu0 0.0
        %1200 = vmatpush1.msra.mxu0 0.0
        %1201 = vmatprep.subr.mxu0 0.0
        %1202 = vmatpush1.msra.mxu0 0.0
        %1203 = vmatprep.subr.mxu0 0.0
        %1204 = vmatpush1.msra.mxu0 0.0
        %1205 = vmatprep.subr.mxu0 0.0
        %1206 = vmatpush1.msra.mxu0 0.0
        %1207 = vmatprep.subr.mxu0 0.0
        %1208 = vmatpush1.msra.mxu0 0.0
        %1209 = vmatprep.mubr.f32.mxu0 0.0
        %1210 = vmatmul.mubr.f32.gmra.mrb[0].mxu0 %v1066
        %v1211 = vpop.f32.mrb[0].mxu0
        %v1212 = vadd.f32 0.0, %v1211
        %v1213 = vpop.f32.mrb[0].mxu0
        %1214 = vdwg.mxu0
        %v1215 = vadd.f32 %v1046, %v1141
        %v1216 = vadd.f32 %v1047, %v1143
        %v1217 = vadd.f32 %v1048, %v1212
        %v1218 = vld [vmem:[%s222] sm:$0xff]
        %v1219 = vld [vmem:[%s222 + $0x8] sm:$0xf]
        %s1220 = scalar_lea.vmem %s1, 48
        %v1221 = vld [vmem:[%s1220] sm:$0xff]
        %v1224 = vcombine.high %v1218, %v1218
        %1225 = vrot.lane.b32.xlu0 %v1218, 92
        %v1226 = vpop.permute.xlu0 %1225
        %1227 = vrot.lane.b32.xlu0 %v1224, 92
        %v1228 = vpop.permute.xlu0 %1227
        %1229 = vrot.lane.b32.xlu0 %v1219, 92
        %v1230 = vpop.permute.xlu0 %1229
        %vm1231 = vcmask 752640
        %v1232 = vsel %vm1231, %v1226, %v1228
        %v1233 = vsel %vm1231, %v1228, %v1230
        %v1235 = vsel %vm240, %v1221, 0
        %v1237 = vsel %vm244, %v1232, 0
        %v1239 = vsel %vm244, %v1233, 0
        %v1241 = vsel %vm244, %v1230, 0
        %1243 = vmatprep.subr.mxu0 %v1239
        %1244 = vmatpush1.msra.mxu0 %v1237
        %1245 = vmatprep.subr.mxu0 0.0
        %1246 = vmatpush1.msra.mxu0 0.0
        %1247 = vmatprep.subr.mxu0 0.0
        %1248 = vmatpush1.msra.mxu0 0.0
        %1249 = vmatprep.subr.mxu0 0.0
        %1250 = vmatpush1.msra.mxu0 0.0
        %1251 = vmatprep.subr.mxu0 0.0
        %1252 = vmatpush1.msra.mxu0 0.0
        %1253 = vmatprep.subr.mxu0 0.0
        %1254 = vmatpush1.msra.mxu0 0.0
        %1255 = vmatprep.subr.mxu0 0.0
        %1256 = vmatpush1.msra.mxu0 0.0
        %1257 = vmatprep.subr.mxu0 0.0
        %1258 = vmatpush1.msra.mxu0 0.0
        %1259 = vmatprep.subr.mxu0 0.0
        %1260 = vmatpush1.msra.mxu0 0.0
        %1261 = vmatprep.subr.mxu0 0.0
        %1262 = vmatpush1.msra.mxu0 0.0
        %1263 = vmatprep.subr.mxu0 0.0
        %1264 = vmatpush1.msra.mxu0 0.0
        %1265 = vmatprep.subr.mxu0 0.0
        %1266 = vmatpush1.msra.mxu0 0.0
        %1267 = vmatprep.subr.mxu0 0.0
        %1268 = vmatpush1.msra.mxu0 0.0
        %1269 = vmatprep.subr.mxu0 0.0
        %1270 = vmatpush1.msra.mxu0 0.0
        %1271 = vmatprep.subr.mxu0 0.0
        %1272 = vmatpush1.msra.mxu0 0.0
        %1273 = vmatprep.subr.mxu0 0.0
        %1274 = vmatpush1.msra.mxu0 0.0
        %1275 = vmatprep.subr.mxu0 0.0
        %1276 = vmatpush1.msra.mxu0 0.0
        %1277 = vmatprep.subr.mxu0 0.0
        %1278 = vmatpush1.msra.mxu0 0.0
        %1279 = vmatprep.subr.mxu0 0.0
        %1280 = vmatpush1.msra.mxu0 0.0
        %1281 = vmatprep.subr.mxu0 0.0
        %1282 = vmatpush1.msra.mxu0 0.0
        %1283 = vmatprep.subr.mxu0 0.0
        %1284 = vmatpush1.msra.mxu0 0.0
        %1285 = vmatprep.subr.mxu0 0.0
        %1286 = vmatpush1.msra.mxu0 0.0
        %1287 = vmatprep.subr.mxu0 0.0
        %1288 = vmatpush1.msra.mxu0 0.0
        %1289 = vmatprep.subr.mxu0 0.0
        %1290 = vmatpush1.msra.mxu0 0.0
        %1291 = vmatprep.subr.mxu0 0.0
        %1292 = vmatpush1.msra.mxu0 0.0
        %1293 = vmatprep.subr.mxu0 0.0
        %1294 = vmatpush1.msra.mxu0 0.0
        %1295 = vmatprep.subr.mxu0 0.0
        %1296 = vmatpush1.msra.mxu0 0.0
        %1297 = vmatprep.subr.mxu0 0.0
        %1298 = vmatpush1.msra.mxu0 0.0
        %1299 = vmatprep.subr.mxu0 0.0
        %1300 = vmatpush1.msra.mxu0 0.0
        %1301 = vmatprep.subr.mxu0 0.0
        %1302 = vmatpush1.msra.mxu0 0.0
        %1303 = vmatprep.subr.mxu0 0.0
        %1304 = vmatpush1.msra.mxu0 0.0
        %1305 = vmatprep.subr.mxu0 0.0
        %1306 = vmatpush1.msra.mxu0 0.0
        %1307 = vmatprep.mubr.f32.mxu0 0.0
        %1308 = vmatmul.mubr.f32.gmra.mrb[0].mxu0 %v1235
        %v1309 = vpop.f32.mrb[0].mxu0
        %v1310 = vadd.f32 0.0, %v1309
        %v1311 = vpop.f32.mrb[0].mxu0
        %v1312 = vadd.f32 0.0, %v1311
        %1313 = vdwg.mxu0
        %1314 = vmatprep.subr.mxu0 0.0
        %1315 = vmatpush1.msra.mxu0 %v1241
        %1316 = vmatprep.subr.mxu0 0.0
        %1317 = vmatpush1.msra.mxu0 0.0
        %1318 = vmatprep.subr.mxu0 0.0
        %1319 = vmatpush1.msra.mxu0 0.0
        %1320 = vmatprep.subr.mxu0 0.0
        %1321 = vmatpush1.msra.mxu0 0.0
        %1322 = vmatprep.subr.mxu0 0.0
        %1323 = vmatpush1.msra.mxu0 0.0
        %1324 = vmatprep.subr.mxu0 0.0
        %1325 = vmatpush1.msra.mxu0 0.0
        %1326 = vmatprep.subr.mxu0 0.0
        %1327 = vmatpush1.msra.mxu0 0.0
        %1328 = vmatprep.subr.mxu0 0.0
        %1329 = vmatpush1.msra.mxu0 0.0
        %1330 = vmatprep.subr.mxu0 0.0
        %1331 = vmatpush1.msra.mxu0 0.0
        %1332 = vmatprep.subr.mxu0 0.0
        %1333 = vmatpush1.msra.mxu0 0.0
        %1334 = vmatprep.subr.mxu0 0.0
        %1335 = vmatpush1.msra.mxu0 0.0
        %1336 = vmatprep.subr.mxu0 0.0
        %1337 = vmatpush1.msra.mxu0 0.0
        %1338 = vmatprep.subr.mxu0 0.0
        %1339 = vmatpush1.msra.mxu0 0.0
        %1340 = vmatprep.subr.mxu0 0.0
        %1341 = vmatpush1.msra.mxu0 0.0
        %1342 = vmatprep.subr.mxu0 0.0
        %1343 = vmatpush1.msra.mxu0 0.0
        %1344 = vmatprep.subr.mxu0 0.0
        %1345 = vmatpush1.msra.mxu0 0.0
        %1346 = vmatprep.subr.mxu0 0.0
        %1347 = vmatpush1.msra.mxu0 0.0
        %1348 = vmatprep.subr.mxu0 0.0
        %1349 = vmatpush1.msra.mxu0 0.0
        %1350 = vmatprep.subr.mxu0 0.0
        %1351 = vmatpush1.msra.mxu0 0.0
        %1352 = vmatprep.subr.mxu0 0.0
        %1353 = vmatpush1.msra.mxu0 0.0
        %1354 = vmatprep.subr.mxu0 0.0
        %1355 = vmatpush1.msra.mxu0 0.0
        %1356 = vmatprep.subr.mxu0 0.0
        %1357 = vmatpush1.msra.mxu0 0.0
        %1358 = vmatprep.subr.mxu0 0.0
        %1359 = vmatpush1.msra.mxu0 0.0
        %1360 = vmatprep.subr.mxu0 0.0
        %1361 = vmatpush1.msra.mxu0 0.0
        %1362 = vmatprep.subr.mxu0 0.0
        %1363 = vmatpush1.msra.mxu0 0.0
        %1364 = vmatprep.subr.mxu0 0.0
        %1365 = vmatpush1.msra.mxu0 0.0
        %1366 = vmatprep.subr.mxu0 0.0
        %1367 = vmatpush1.msra.mxu0 0.0
        %1368 = vmatprep.subr.mxu0 0.0
        %1369 = vmatpush1.msra.mxu0 0.0
        %1370 = vmatprep.subr.mxu0 0.0
        %1371 = vmatpush1.msra.mxu0 0.0
        %1372 = vmatprep.subr.mxu0 0.0
        %1373 = vmatpush1.msra.mxu0 0.0
        %1374 = vmatprep.subr.mxu0 0.0
        %1375 = vmatpush1.msra.mxu0 0.0
        %1376 = vmatprep.subr.mxu0 0.0
        %1377 = vmatpush1.msra.mxu0 0.0
        %1378 = vmatprep.mubr.f32.mxu0 0.0
        %1379 = vmatmul.mubr.f32.gmra.mrb[0].mxu0 %v1235
        %v1380 = vpop.f32.mrb[0].mxu0
        %v1381 = vadd.f32 0.0, %v1380
        %v1382 = vpop.f32.mrb[0].mxu0
        %1383 = vdwg.mxu0
        %v1384 = vadd.f32 %v1215, %v1310
        %v1385 = vadd.f32 %v1216, %v1312
        %v1386 = vadd.f32 %v1217, %v1381
        %v1387 = vld [vmem:[%s222] sm:$0xff]
        %v1388 = vld [vmem:[%s222 + $0x8] sm:$0xf]
        %s1389 = scalar_lea.vmem %s1, 56
        %v1390 = vld [vmem:[%s1389] sm:$0xff]
        %v1393 = vcombine.high %v1387, %v1387
        %1394 = vrot.lane.b32.xlu0 %v1387, 91
        %v1395 = vpop.permute.xlu0 %1394
        %1396 = vrot.lane.b32.xlu0 %v1393, 91
        %v1397 = vpop.permute.xlu0 %1396
        %1398 = vrot.lane.b32.xlu0 %v1388, 91
        %v1399 = vpop.permute.xlu0 %1398
        %vm1400 = vcmask 744448
        %v1401 = vsel %vm1400, %v1395, %v1397
        %v1402 = vsel %vm1400, %v1397, %v1399
        %v1404 = vsel %vm240, %v1390, 0
        %v1406 = vsel %vm244, %v1401, 0
        %v1408 = vsel %vm244, %v1402, 0
        %v1410 = vsel %vm244, %v1399, 0
        %1412 = vmatprep.subr.mxu0 %v1408
        %1413 = vmatpush1.msra.mxu0 %v1406
        %1414 = vmatprep.subr.mxu0 0.0
        %1415 = vmatpush1.msra.mxu0 0.0
        %1416 = vmatprep.subr.mxu0 0.0
        %1417 = vmatpush1.msra.mxu0 0.0
        %1418 = vmatprep.subr.mxu0 0.0
        %1419 = vmatpush1.msra.mxu0 0.0
        %1420 = vmatprep.subr.mxu0 0.0
        %1421 = vmatpush1.msra.mxu0 0.0
        %1422 = vmatprep.subr.mxu0 0.0
        %1423 = vmatpush1.msra.mxu0 0.0
        %1424 = vmatprep.subr.mxu0 0.0
        %1425 = vmatpush1.msra.mxu0 0.0
        %1426 = vmatprep.subr.mxu0 0.0
        %1427 = vmatpush1.msra.mxu0 0.0
        %1428 = vmatprep.subr.mxu0 0.0
        %1429 = vmatpush1.msra.mxu0 0.0
        %1430 = vmatprep.subr.mxu0 0.0
        %1431 = vmatpush1.msra.mxu0 0.0
        %1432 = vmatprep.subr.mxu0 0.0
        %1433 = vmatpush1.msra.mxu0 0.0
        %1434 = vmatprep.subr.mxu0 0.0
        %1435 = vmatpush1.msra.mxu0 0.0
        %1436 = vmatprep.subr.mxu0 0.0
        %1437 = vmatpush1.msra.mxu0 0.0
        %1438 = vmatprep.subr.mxu0 0.0
        %1439 = vmatpush1.msra.mxu0 0.0
        %1440 = vmatprep.subr.mxu0 0.0
        %1441 = vmatpush1.msra.mxu0 0.0
        %1442 = vmatprep.subr.mxu0 0.0
        %1443 = vmatpush1.msra.mxu0 0.0
        %1444 = vmatprep.subr.mxu0 0.0
        %1445 = vmatpush1.msra.mxu0 0.0
        %1446 = vmatprep.subr.mxu0 0.0
        %1447 = vmatpush1.msra.mxu0 0.0
        %1448 = vmatprep.subr.mxu0 0.0
        %1449 = vmatpush1.msra.mxu0 0.0
        %1450 = vmatprep.subr.mxu0 0.0
        %1451 = vmatpush1.msra.mxu0 0.0
        %1452 = vmatprep.subr.mxu0 0.0
        %1453 = vmatpush1.msra.mxu0 0.0
        %1454 = vmatprep.subr.mxu0 0.0
        %1455 = vmatpush1.msra.mxu0 0.0
        %1456 = vmatprep.subr.mxu0 0.0
        %1457 = vmatpush1.msra.mxu0 0.0
        %1458 = vmatprep.subr.mxu0 0.0
        %1459 = vmatpush1.msra.mxu0 0.0
        %1460 = vmatprep.subr.mxu0 0.0
        %1461 = vmatpush1.msra.mxu0 0.0
        %1462 = vmatprep.subr.mxu0 0.0
        %1463 = vmatpush1.msra.mxu0 0.0
        %1464 = vmatprep.subr.mxu0 0.0
        %1465 = vmatpush1.msra.mxu0 0.0
        %1466 = vmatprep.subr.mxu0 0.0
        %1467 = vmatpush1.msra.mxu0 0.0
        %1468 = vmatprep.subr.mxu0 0.0
        %1469 = vmatpush1.msra.mxu0 0.0
        %1470 = vmatprep.subr.mxu0 0.0
        %1471 = vmatpush1.msra.mxu0 0.0
        %1472 = vmatprep.subr.mxu0 0.0
        %1473 = vmatpush1.msra.mxu0 0.0
        %1474 = vmatprep.subr.mxu0 0.0
        %1475 = vmatpush1.msra.mxu0 0.0
        %1476 = vmatprep.mubr.f32.mxu0 0.0
        %1477 = vmatmul.mubr.f32.gmra.mrb[0].mxu0 %v1404
        %v1478 = vpop.f32.mrb[0].mxu0
        %v1479 = vadd.f32 0.0, %v1478
        %v1480 = vpop.f32.mrb[0].mxu0
        %v1481 = vadd.f32 0.0, %v1480
        %1482 = vdwg.mxu0
        %1483 = vmatprep.subr.mxu0 0.0
        %1484 = vmatpush1.msra.mxu0 %v1410
        %1485 = vmatprep.subr.mxu0 0.0
        %1486 = vmatpush1.msra.mxu0 0.0
        %1487 = vmatprep.subr.mxu0 0.0
        %1488 = vmatpush1.msra.mxu0 0.0
        %1489 = vmatprep.subr.mxu0 0.0
        %1490 = vmatpush1.msra.mxu0 0.0
        %1491 = vmatprep.subr.mxu0 0.0
        %1492 = vmatpush1.msra.mxu0 0.0
        %1493 = vmatprep.subr.mxu0 0.0
        %1494 = vmatpush1.msra.mxu0 0.0
        %1495 = vmatprep.subr.mxu0 0.0
        %1496 = vmatpush1.msra.mxu0 0.0
        %1497 = vmatprep.subr.mxu0 0.0
        %1498 = vmatpush1.msra.mxu0 0.0
        %1499 = vmatprep.subr.mxu0 0.0
        %1500 = vmatpush1.msra.mxu0 0.0
        %1501 = vmatprep.subr.mxu0 0.0
        %1502 = vmatpush1.msra.mxu0 0.0
        %1503 = vmatprep.subr.mxu0 0.0
        %1504 = vmatpush1.msra.mxu0 0.0
        %1505 = vmatprep.subr.mxu0 0.0
        %1506 = vmatpush1.msra.mxu0 0.0
        %1507 = vmatprep.subr.mxu0 0.0
        %1508 = vmatpush1.msra.mxu0 0.0
        %1509 = vmatprep.subr.mxu0 0.0
        %1510 = vmatpush1.msra.mxu0 0.0
        %1511 = vmatprep.subr.mxu0 0.0
        %1512 = vmatpush1.msra.mxu0 0.0
        %1513 = vmatprep.subr.mxu0 0.0
        %1514 = vmatpush1.msra.mxu0 0.0
        %1515 = vmatprep.subr.mxu0 0.0
        %1516 = vmatpush1.msra.mxu0 0.0
        %1517 = vmatprep.subr.mxu0 0.0
        %1518 = vmatpush1.msra.mxu0 0.0
        %1519 = vmatprep.subr.mxu0 0.0
        %1520 = vmatpush1.msra.mxu0 0.0
        %1521 = vmatprep.subr.mxu0 0.0
        %1522 = vmatpush1.msra.mxu0 0.0
        %1523 = vmatprep.subr.mxu0 0.0
        %1524 = vmatpush1.msra.mxu0 0.0
        %1525 = vmatprep.subr.mxu0 0.0
        %1526 = vmatpush1.msra.mxu0 0.0
        %1527 = vmatprep.subr.mxu0 0.0
        %1528 = vmatpush1.msra.mxu0 0.0
        %1529 = vmatprep.subr.mxu0 0.0
        %1530 = vmatpush1.msra.mxu0 0.0
        %1531 = vmatprep.subr.mxu0 0.0
        %1532 = vmatpush1.msra.mxu0 0.0
        %1533 = vmatprep.subr.mxu0 0.0
        %1534 = vmatpush1.msra.mxu0 0.0
        %1535 = vmatprep.subr.mxu0 0.0
        %1536 = vmatpush1.msra.mxu0 0.0
        %1537 = vmatprep.subr.mxu0 0.0
        %1538 = vmatpush1.msra.mxu0 0.0
        %1539 = vmatprep.subr.mxu0 0.0
        %1540 = vmatpush1.msra.mxu0 0.0
        %1541 = vmatprep.subr.mxu0 0.0
        %1542 = vmatpush1.msra.mxu0 0.0
        %1543 = vmatprep.subr.mxu0 0.0
        %1544 = vmatpush1.msra.mxu0 0.0
        %1545 = vmatprep.subr.mxu0 0.0
        %1546 = vmatpush1.msra.mxu0 0.0
        %1547 = vmatprep.mubr.f32.mxu0 0.0
        %1548 = vmatmul.mubr.f32.gmra.mrb[0].mxu0 %v1404
        %v1549 = vpop.f32.mrb[0].mxu0
        %v1550 = vadd.f32 0.0, %v1549
        %v1551 = vpop.f32.mrb[0].mxu0
        %1552 = vdwg.mxu0
        %v1553 = vadd.f32 %v1384, %v1479
        %v1554 = vadd.f32 %v1385, %v1481
        %v1555 = vadd.f32 %v1386, %v1550
        %v1556 = vld [vmem:[%s222] sm:$0xff]
        %v1557 = vld [vmem:[%s222 + $0x8] sm:$0xf]
        %s1558 = scalar_lea.vmem %s1, 64
        %v1559 = vld [vmem:[%s1558] sm:$0xff]
        %v1562 = vcombine.high %v1556, %v1556
        %1563 = vrot.lane.b32.xlu0 %v1556, 90
        %v1564 = vpop.permute.xlu0 %1563
        %1565 = vrot.lane.b32.xlu0 %v1562, 90
        %v1566 = vpop.permute.xlu0 %1565
        %1567 = vrot.lane.b32.xlu0 %v1557, 90
        %v1568 = vpop.permute.xlu0 %1567
        %vm1569 = vcmask 736256
        %v1570 = vsel %vm1569, %v1564, %v1566
        %v1571 = vsel %vm1569, %v1566, %v1568
        %v1573 = vsel %vm240, %v1559, 0
        %v1575 = vsel %vm244, %v1570, 0
        %v1577 = vsel %vm244, %v1571, 0
        %v1579 = vsel %vm244, %v1568, 0
        %1581 = vmatprep.subr.mxu0 %v1577
        %1582 = vmatpush1.msra.mxu0 %v1575
        %1583 = vmatprep.subr.mxu0 0.0
        %1584 = vmatpush1.msra.mxu0 0.0
        %1585 = vmatprep.subr.mxu0 0.0
        %1586 = vmatpush1.msra.mxu0 0.0
        %1587 = vmatprep.subr.mxu0 0.0
        %1588 = vmatpush1.msra.mxu0 0.0
        %1589 = vmatprep.subr.mxu0 0.0
        %1590 = vmatpush1.msra.mxu0 0.0
        %1591 = vmatprep.subr.mxu0 0.0
        %1592 = vmatpush1.msra.mxu0 0.0
        %1593 = vmatprep.subr.mxu0 0.0
        %1594 = vmatpush1.msra.mxu0 0.0
        %1595 = vmatprep.subr.mxu0 0.0
        %1596 = vmatpush1.msra.mxu0 0.0
        %1597 = vmatprep.subr.mxu0 0.0
        %1598 = vmatpush1.msra.mxu0 0.0
        %1599 = vmatprep.subr.mxu0 0.0
        %1600 = vmatpush1.msra.mxu0 0.0
        %1601 = vmatprep.subr.mxu0 0.0
        %1602 = vmatpush1.msra.mxu0 0.0
        %1603 = vmatprep.subr.mxu0 0.0
        %1604 = vmatpush1.msra.mxu0 0.0
        %1605 = vmatprep.subr.mxu0 0.0
        %1606 = vmatpush1.msra.mxu0 0.0
        %1607 = vmatprep.subr.mxu0 0.0
        %1608 = vmatpush1.msra.mxu0 0.0
        %1609 = vmatprep.subr.mxu0 0.0
        %1610 = vmatpush1.msra.mxu0 0.0
        %1611 = vmatprep.subr.mxu0 0.0
        %1612 = vmatpush1.msra.mxu0 0.0
        %1613 = vmatprep.subr.mxu0 0.0
        %1614 = vmatpush1.msra.mxu0 0.0
        %1615 = vmatprep.subr.mxu0 0.0
        %1616 = vmatpush1.msra.mxu0 0.0
        %1617 = vmatprep.subr.mxu0 0.0
        %1618 = vmatpush1.msra.mxu0 0.0
        %1619 = vmatprep.subr.mxu0 0.0
        %1620 = vmatpush1.msra.mxu0 0.0
        %1621 = vmatprep.subr.mxu0 0.0
        %1622 = vmatpush1.msra.mxu0 0.0
        %1623 = vmatprep.subr.mxu0 0.0
        %1624 = vmatpush1.msra.mxu0 0.0
        %1625 = vmatprep.subr.mxu0 0.0
        %1626 = vmatpush1.msra.mxu0 0.0
        %1627 = vmatprep.subr.mxu0 0.0
        %1628 = vmatpush1.msra.mxu0 0.0
        %1629 = vmatprep.subr.mxu0 0.0
        %1630 = vmatpush1.msra.mxu0 0.0
        %1631 = vmatprep.subr.mxu0 0.0
        %1632 = vmatpush1.msra.mxu0 0.0
        %1633 = vmatprep.subr.mxu0 0.0
        %1634 = vmatpush1.msra.mxu0 0.0
        %1635 = vmatprep.subr.mxu0 0.0
        %1636 = vmatpush1.msra.mxu0 0.0
        %1637 = vmatprep.subr.mxu0 0.0
        %1638 = vmatpush1.msra.mxu0 0.0
        %1639 = vmatprep.subr.mxu0 0.0
        %1640 = vmatpush1.msra.mxu0 0.0
        %1641 = vmatprep.subr.mxu0 0.0
        %1642 = vmatpush1.msra.mxu0 0.0
        %1643 = vmatprep.subr.mxu0 0.0
        %1644 = vmatpush1.msra.mxu0 0.0
        %1645 = vmatprep.mubr.f32.mxu0 0.0
        %1646 = vmatmul.mubr.f32.gmra.mrb[0].mxu0 %v1573
        %v1647 = vpop.f32.mrb[0].mxu0
        %v1648 = vadd.f32 0.0, %v1647
        %v1649 = vpop.f32.mrb[0].mxu0
        %v1650 = vadd.f32 0.0, %v1649
        %1651 = vdwg.mxu0
        %1652 = vmatprep.subr.mxu0 0.0
        %1653 = vmatpush1.msra.mxu0 %v1579
        %1654 = vmatprep.subr.mxu0 0.0
        %1655 = vmatpush1.msra.mxu0 0.0
        %1656 = vmatprep.subr.mxu0 0.0
        %1657 = vmatpush1.msra.mxu0 0.0
        %1658 = vmatprep.subr.mxu0 0.0
        %1659 = vmatpush1.msra.mxu0 0.0
        %1660 = vmatprep.subr.mxu0 0.0
        %1661 = vmatpush1.msra.mxu0 0.0
        %1662 = vmatprep.subr.mxu0 0.0
        %1663 = vmatpush1.msra.mxu0 0.0
        %1664 = vmatprep.subr.mxu0 0.0
        %1665 = vmatpush1.msra.mxu0 0.0
        %1666 = vmatprep.subr.mxu0 0.0
        %1667 = vmatpush1.msra.mxu0 0.0
        %1668 = vmatprep.subr.mxu0 0.0
        %1669 = vmatpush1.msra.mxu0 0.0
        %1670 = vmatprep.subr.mxu0 0.0
        %1671 = vmatpush1.msra.mxu0 0.0
        %1672 = vmatprep.subr.mxu0 0.0
        %1673 = vmatpush1.msra.mxu0 0.0
        %1674 = vmatprep.subr.mxu0 0.0
        %1675 = vmatpush1.msra.mxu0 0.0
        %1676 = vmatprep.subr.mxu0 0.0
        %1677 = vmatpush1.msra.mxu0 0.0
        %1678 = vmatprep.subr.mxu0 0.0
        %1679 = vmatpush1.msra.mxu0 0.0
        %1680 = vmatprep.subr.mxu0 0.0
        %1681 = vmatpush1.msra.mxu0 0.0
        %1682 = vmatprep.subr.mxu0 0.0
        %1683 = vmatpush1.msra.mxu0 0.0
        %1684 = vmatprep.subr.mxu0 0.0
        %1685 = vmatpush1.msra.mxu0 0.0
        %1686 = vmatprep.subr.mxu0 0.0
        %1687 = vmatpush1.msra.mxu0 0.0
        %1688 = vmatprep.subr.mxu0 0.0
        %1689 = vmatpush1.msra.mxu0 0.0
        %1690 = vmatprep.subr.mxu0 0.0
        %1691 = vmatpush1.msra.mxu0 0.0
        %1692 = vmatprep.subr.mxu0 0.0
        %1693 = vmatpush1.msra.mxu0 0.0
        %1694 = vmatprep.subr.mxu0 0.0
        %1695 = vmatpush1.msra.mxu0 0.0
        %1696 = vmatprep.subr.mxu0 0.0
        %1697 = vmatpush1.msra.mxu0 0.0
        %1698 = vmatprep.subr.mxu0 0.0
        %1699 = vmatpush1.msra.mxu0 0.0
        %1700 = vmatprep.subr.mxu0 0.0
        %1701 = vmatpush1.msra.mxu0 0.0
        %1702 = vmatprep.subr.mxu0 0.0
        %1703 = vmatpush1.msra.mxu0 0.0
        %1704 = vmatprep.subr.mxu0 0.0
        %1705 = vmatpush1.msra.mxu0 0.0
        %1706 = vmatprep.subr.mxu0 0.0
        %1707 = vmatpush1.msra.mxu0 0.0
        %1708 = vmatprep.subr.mxu0 0.0
        %1709 = vmatpush1.msra.mxu0 0.0
        %1710 = vmatprep.subr.mxu0 0.0
        %1711 = vmatpush1.msra.mxu0 0.0
        %1712 = vmatprep.subr.mxu0 0.0
        %1713 = vmatpush1.msra.mxu0 0.0
        %1714 = vmatprep.subr.mxu0 0.0
        %1715 = vmatpush1.msra.mxu0 0.0
        %1716 = vmatprep.mubr.f32.mxu0 0.0
        %1717 = vmatmul.mubr.f32.gmra.mrb[0].mxu0 %v1573
        %v1718 = vpop.f32.mrb[0].mxu0
        %v1719 = vadd.f32 0.0, %v1718
        %v1720 = vpop.f32.mrb[0].mxu0
        %1721 = vdwg.mxu0
        %v1722 = vadd.f32 %v1553, %v1648
        %v1723 = vadd.f32 %v1554, %v1650
        %v1724 = vadd.f32 %v1555, %v1719
        %v1725 = vld [vmem:[%s4] sm:$0x7]
        %v1727 = vlaneseq
        %v1728 = vshrl.u32 %v1727, 7
        %v1729 = vsub.s32 0, %v1728
        %v1730 = vrot.slane %v1725, %v1729
        %v1731 = vlaneseq
        %v1732 = vshrl.u32 %v1731, 7
        %v1733 = vsub.s32 1, %v1732
        %v1734 = vrot.slane %v1725, %v1733
        %v1735 = vlaneseq
        %v1736 = vshrl.u32 %v1735, 7
        %v1737 = vsub.s32 2, %v1736
        %v1738 = vrot.slane %v1725, %v1737
        %v1742 = vmul.f32 %v1722, %v1730
        %v1743 = vmul.f32 %v1723, %v1734
        %v1744 = vmul.f32 %v1724, %v1738
        %v1745 = vadd.f32 %v1742, %v1743
        %vm1746 = vcmask 261120
        %v1747 = vsel %vm1746, %v1744, 0.0
        %v1748 = vadd.f32 %v1745, %v1747
        %1749 = vadd.xlane.f32.xlu0 %v1748
        %v1750 = vpop.xlane.xlu0 %1749
        %v1751 = vmul.f32 %v1750, 0.00390625
        %v1752 = vsub.f32 %v1722, %v1751
        %v1753 = vsub.f32 %v1723, %v1751
        %v1754 = vsub.f32 %v1724, %v1751
        %v1755 = vmul.f32 %v1752, %v1752
        %v1756 = vmul.f32 %v1753, %v1753
        %v1757 = vmul.f32 %v1754, %v1754
        %v1758 = vmul.f32 %v1755, %v1730
        %v1759 = vmul.f32 %v1756, %v1734
        %v1760 = vmul.f32 %v1757, %v1738
        %v1761 = vadd.f32 %v1758, %v1759
        %v1762 = vsel %vm1746, %v1760, 0.0
        %v1763 = vadd.f32 %v1761, %v1762
        %1764 = vadd.xlane.f32.xlu0 %v1763
        %v1765 = vpop.xlane.xlu0 %1764
        %v1766 = vmul.f32 %v1765, 0.00390625
        %v1767 = vadd.f32 %v1766, 1e-05
        %v1768 = vrsqrt.pop %v1767
        %v1769 = vmul.f32 %v1752, %v1768
        %v1770 = vmul.f32 %v1753, %v1768
        %v1771 = vmul.f32 %v1754, %v1768
        %v1772 = vld [vmem:[%s2] sm:$0xff]
        %1774 = vset.pattern.permute.xlu0 0
        %1775 = vperm.xlu0 %1774, %v1772
        %v1776 = vpop.permute.xlu0 %1775
        %v1778 = vmul.f32 %v1769, %v1776
        %v1779 = vmul.f32 %v1770, %v1776
        %v1780 = vmul.f32 %v1771, %v1776
        %v1781 = vld [vmem:[%s3] sm:$0xff]
        %1783 = vset.pattern.permute.xlu0 0
        %1784 = vperm.xlu0 %1783, %v1781
        %v1785 = vpop.permute.xlu0 %1784
        %v1787 = vadd.f32 %v1778, %v1785
        %v1788 = vadd.f32 %v1779, %v1785
        %v1789 = vadd.f32 %v1780, %v1785
        %v1790 = vmax.f32 %v1787, 0.0
        %v1791 = vmax.f32 %v1788, 0.0
        %v1792 = vmax.f32 %v1789, 0.0
        %1793 = vst [vmem:[%s217] sm:$0xff] %v1790
        %1794 = vst [vmem:[%s217 + $0x8] sm:$0xff] %v1791
        %1795 = vst.msk [vmem:[%s217 + $0x10] sm:$0xff] %vm1746, %v1792
        %s1796 = sand.u32 %s137, 1
        %s1797 = scalar_lea.sflag [#allocation3], %s1796
        %s1798 = sand.u32 %s137, 1
        %s1799 = smul.addr %s1798, 24
        %s1800 = scalar_lea.vmem [#allocation2], %s1799
        // Predicated region
        $region41: #{tpu_custom_call.1} parent=39 // pred_check
          %p1801 = pneg %p147
        $region42: #{tpu_custom_call.1} parent=39 // pred_check_branch
          %1803 = sbr.rel (%p1801) target = $region44
        $region43: #{tpu_custom_call.1} parent=39 // pred_region
          %s1805 = ssub.s32 384, 384
          %1806 = vsyncadd %s1797, %s1805
          %s1807 = smul.addr %s19, 3
          %s1808 = smul.addr %s1807, 128
          %s1809 = scalar_lea.hbm %s5, %s1808
          %s1811 = sshll.u32 %s1800, 4
          %s1812 = int_to_ptr.vmem [resolvable:$true] %s1811
          %1814 = dma.vmem_to_hbm [thread:$0]  %s1812, 384, %s1809, %s1797
        $region44: #{tpu_custom_call.1} parent=39 // pred_fallthru
          _
      $region40: #{tpu_custom_call.1} parent=5 // pred_fallthru
        _
      %p1815 = scmp.le.s32.totalorder 2, %s14
      // Predicated region
      $region45: #{tpu_custom_call.1} parent=5 // pred_check
        %p1816 = pneg %p1815
      $region46: #{tpu_custom_call.1} parent=5 // pred_check_branch
        %1818 = sbr.rel (%p1816) target = $region48
      $region47: #{tpu_custom_call.1} parent=5 // pred_region
        %s1819 = ssub.s32 %s14, 2
        // Predicated region
        $region49: #{tpu_custom_call.1} parent=47 // pred_check
          %p1820 = pneg %p153
        $region50: #{tpu_custom_call.1} parent=47 // pred_check_branch
          %1822 = sbr.rel (%p1820) target = $region52
        $region51: #{tpu_custom_call.1} parent=47 // pred_region
          %s1823 = sand.u32 %s138, 1
          %s1824 = scalar_lea.sflag [#allocation3], %s1823
          %s1825 = sand.u32 %s138, 1
          %s1826 = smul.addr %s1825, 24
          %s1827 = scalar_lea.vmem [#allocation2], %s1826
          %1828 = dma.done %s1824, 384
        $region52: #{tpu_custom_call.1} parent=47 // pred_fallthru
          _
      $region48: #{tpu_custom_call.1} parent=5 // pred_fallthru
        _
    $region6: #{tpu_custom_call.1} parent=1 // loop_footer
      %s18 = sadd.s32 1, %s14
    $region7: #{tpu_custom_call.1} parent=1 // loop_footer_branch
      %13 = sbr.rel target = $region3
    $region8: #{tpu_custom_call.1} parent=1 // loop_exit
      _
    %1829 = vsyncpa [#allocation3], 1
    %s1830 = scalar_lea.sflag [#allocation3], 1
    %1831 = vsyncpa %s1830, 1

</llo_original>
